<compile_context>
chip_gen: v6e
topology: v6e:2x2x1
jax: 0.10.0
libtpu: 0.0.40
codegen_flags: <defaults>
</compile_context>

<pallas_src>
import jax
import jax.numpy as jnp
import numpy as np
from jax.experimental import pallas as pl
from jax.experimental.pallas import tpu as pltpu


# ----------------------------- Pallas kernel --------------------------------
def rnn_receiver_gs_kernel(msg_ref, inp_ref,
                           win_ref, bin_ref,
                           wgi_ref, bgi_ref,
                           whh_ref, bhhn_ref,
                           out_ref,
                           h_all):
    # static dims (all derivable from the refs)
    T, Bt, H = h_all.shape
    C = inp_ref.shape[0] // Bt
    f32, bf16 = jnp.float32, jnp.bfloat16

    # ---- candidate encoder: one (Bt*C, F)@(F, H) GEMM (bf16 operands, f32 acc)
    emb = jnp.tanh(
        jnp.dot(inp_ref[...].astype(bf16), win_ref[...],
                preferred_element_type=f32)
        + bin_ref[...])                                            # (Bt*C, H) f32

    # ---- fused input-side gate projection for ALL T steps: one GEMM.
    # msg rows are time-major within the tile (row = t*Bt + b), so per-step
    # slices below are contiguous.
    gi = (jnp.dot(msg_ref[...].astype(bf16), wgi_ref[...],
                  preferred_element_type=f32)
          + bgi_ref[...])                                          # (T*Bt, 3H) f32

    whh = whh_ref[...]                                             # (H, 3H) bf16
    bhh_n = bhhn_ref[...]                                          # (1, H)  f32

    # ---- serial GRU recurrence: ONE fused h@Whh MXU pass + ONE store per step
    # TODO(synk): for long messages (T >~ 32) switch to lax.fori_loop(unroll=4..8)
    # with gi staged in a VMEM scratch to bound vreg live ranges.
    h = jnp.zeros((Bt, H), f32)
    for t in range(T):                         # T static -> fully unrolled
        gh = jnp.dot(h.astype(bf16), whh, preferred_element_type=f32)  # (Bt, 3H)
        gi_t = gi[t * Bt:(t + 1) * Bt, :]
        r = jax.nn.sigmoid(gi_t[:, :H] + gh[:, :H])
        z = jax.nn.sigmoid(gi_t[:, H:2 * H] + gh[:, H:2 * H])
        n = jnp.tanh(gi_t[:, 2 * H:] + r * (gh[:, 2 * H:] + bhh_n))
        h = (1.0 - z) * n + z * h
        h_all[t] = h                           # single full (Bt, H) store

    # ---- batched epilogue: per-example MXU energy GEMMs, one log-softmax,
    #      one store of the whole (Bt*T, C) block.
    ens = []
    for b in range(Bt):
        h_b = h_all[:, b, :]                                       # (T, H)
        emb_b = emb[b * C:(b + 1) * C, :]                          # (C, H)
        ens.append(jax.lax.dot_general(
            h_b.astype(bf16), emb_b.astype(bf16),
            (((1,), (1,)), ((), ())),
            preferred_element_type=f32))                           # (T, C)
    en = jnp.concatenate(ens, axis=0) if Bt > 1 else ens[0]        # (Bt*T, C)
    mx = jnp.max(en, axis=1, keepdims=True)
    lse = mx + jnp.log(jnp.sum(jnp.exp(en - mx), axis=1, keepdims=True))
    out_ref[...] = en - lse


# ------------------------------- wrapper -------------------------------------
def rnn_receiver_gs(message, _input, params, *, batch_block=None):
    """message: (B, T, V), _input: (B, C, F) -> (B, T, C) log-probs."""
    B, T, V = message.shape
    _, C, F = _input.shape
    H = params["win_t"].shape[1]

    # batch tile: split across the grid only when each tile keeps full sublanes
    if batch_block is None:
        bt = 8 if (B > 8 and B % 8 == 0) else B
    else:
        bt = batch_block
    assert B % bt == 0 and (bt == B or bt % 8 == 0), \
        "batch tile must be the full batch or a multiple of 8"
    nb = B // bt

    hi = jax.lax.Precision.HIGHEST
    wih, whh = params["wih_t"], params["whh_t"]     # (E,3H), (H,3H), gates [r,z,n]
    bih, bhh = params["bih"], params["bhh"]         # (1,3H), (1,3H)

    # Fold message_encoder Linear into the GRU input projection (pure algebra):
    #   (m @ Wmsg^T + bmsg) @ Wih^T + bih == m @ (Wmsg^T Wih^T) + (bmsg Wih^T + bih)
    wgi = jnp.dot(params["wmsg_t"], wih, precision=hi)              # (V, 3H)
    bgi = jnp.dot(params["bmsg"], wih, precision=hi) + bih          # (1, 3H)
    bgi = bgi.at[:, :2 * H].add(bhh[:, :2 * H])     # fold b_hr / b_hz
    bhh_n = bhh[:, 2 * H:]                          # b_hn stays inside r*(.)

    # bf16 weights -> single-pass MXU matmuls (f32 accumulation in-kernel)
    win_bf = params["win_t"].astype(jnp.bfloat16)
    wgi_bf = wgi.astype(jnp.bfloat16)
    whh_bf = whh.astype(jnp.bfloat16)

    # group by batch tile so the kernel sees 2-D slabs and needs no in-kernel
    # transposes: message rows time-major within a tile (row = t*bt + b_local).
    msg_g = (message.reshape(nb, bt, T, V)
                    .transpose(0, 2, 1, 3)
                    .reshape(nb, T * bt, V))
    inp_g = _input.reshape(nb, bt * C, F)           # row = b_local*C + c

    inputs = (msg_g, inp_g, win_bf, params["bin"], wgi_bf, bgi, whh_bf, bhh_n)

    def full2d(x):
        return pl.BlockSpec(x.shape, lambda i: (0, 0))

    grid_spec = pltpu.PrefetchScalarGridSpec(
        num_scalar_prefetch=0,
        grid=(nb,),                                 # parallel batch-tile axis
        in_specs=[pl.BlockSpec((None, T * bt, V), lambda i: (i, 0, 0)),
                  pl.BlockSpec((None, bt * C, F), lambda i: (i, 0, 0))]
                 + [full2d(x) for x in inputs[2:]],
        out_specs=pl.BlockSpec((None, bt * T, C), lambda i: (i, 0, 0)),
        scratch_shapes=[pltpu.VMEM((T, bt, H), jnp.float32)],
    )

    out_g = pl.pallas_call(
        rnn_receiver_gs_kernel,
        out_shape=jax.ShapeDtypeStruct((nb, bt * T, C), jnp.float32),
        grid_spec=grid_spec,
        compiler_params=pltpu.CompilerParams(
            dimension_semantics=("parallel",)),
    )(*inputs)

    # out_g row within a tile = b_local*T + t  ->  plain row-major reshape
    return out_g.reshape(B, T, C)


# --------------------------- pure-JAX reference -------------------------------
def rnn_receiver_gs_ref(message, _input, params):
    ei = jnp.tanh(_input @ params["win_t"] + params["bin"])          # (B, C, H)
    em = message @ params["wmsg_t"] + params["bmsg"]                 # (B, T, E)
    B, T, _ = message.shape
    H = params["whh_t"].shape[0]
    h = jnp.zeros((B, H), jnp.float32)
    outs = []
    for t in range(T):
        e_t = em[:, t]
        gi = e_t @ params["wih_t"] + params["bih"]
        gh = h @ params["whh_t"] + params["bhh"]
        r = jax.nn.sigmoid(gi[:, :H] + gh[:, :H])
        z = jax.nn.sigmoid(gi[:, H:2 * H] + gh[:, H:2 * H])
        n = jnp.tanh(gi[:, 2 * H:] + r * gh[:, 2 * H:])
        h = (1.0 - z) * n + z * h
        energies = jnp.einsum("bch,bh->bc", ei, h)
        outs.append(jax.nn.log_softmax(energies, axis=1))
    return jnp.stack(outs, axis=1)


# --------------------------------- main ---------------------------------------
if __name__ == "__main__":
    key = jax.random.PRNGKey(0)
    keys = jax.random.split(key, 12)

    T, V = 8, 16             # message length, vocab_size
    C, F = 4, 16             # n_candidates, n_features
    E, H = 32, 32            # embedding, receiver_hidden

    scale = 0.1
    params = dict(
        wmsg_t=scale * jax.random.normal(keys[0], (V, E), jnp.float32),
        bmsg=scale * jax.random.normal(keys[1], (1, E), jnp.float32),
        win_t=scale * jax.random.normal(keys[2], (F, H), jnp.float32),
        bin=scale * jax.random.normal(keys[3], (1, H), jnp.float32),
        wih_t=scale * jax.random.normal(keys[4], (E, 3 * H), jnp.float32),
        whh_t=scale * jax.random.normal(keys[5], (H, 3 * H), jnp.float32),
        bih=scale * jax.random.normal(keys[6], (1, 3 * H), jnp.float32),
        bhh=scale * jax.random.normal(keys[7], (1, 3 * H), jnp.float32),
    )

    # bf16 matmul operands (f32 accumulation) need a slightly wider tolerance
    # than the previous all-f32 kernel.
    RTOL = ATOL = 2e-2

    # case 1: tiny batch -> single fused program (grid=(1,))
    B = 2
    msg_logits = jax.random.normal(keys[8], (B, T, V), jnp.float32)
    message = jax.nn.softmax(msg_logits / 0.5, axis=-1)
    _input = jax.random.normal(keys[9], (B, C, F), jnp.float32)
    out = jax.block_until_ready(rnn_receiver_gs(message, _input, params))
    ref = rnn_receiver_gs_ref(message, _input, params)
    np.testing.assert_allclose(np.asarray(out), np.asarray(ref), rtol=RTOL, atol=ATOL)

    # case 2: larger batch -> parallel batch-tile grid (grid=(2,), 2 TCs on v7x)
    B = 16
    msg_logits = jax.random.normal(keys[10], (B, T, V), jnp.float32)
    message = jax.nn.softmax(msg_logits / 0.5, axis=-1)
    _input = jax.random.normal(keys[11], (B, C, F), jnp.float32)
    out = jax.block_until_ready(rnn_receiver_gs(message, _input, params))
    ref = rnn_receiver_gs_ref(message, _input, params)
    np.testing.assert_allclose(np.asarray(out), np.asarray(ref), rtol=RTOL, atol=ATOL)

    # TODO(synk): SeeingConvNet (image_input=True) and the rnn/lstm cell variants
    # are not selected by this opts configuration, hence not implemented here.
    print("KERNEL_OK")
</pallas_src>

<mosaic_0001>
module attributes {stable_mosaic.version = 11 : i64} {
  func.func @rnn_receiver_gs_kernel(%arg0: i32, %arg1: memref<1x16x16xf32, #tpu.memory_space<vmem>>, %arg2: memref<1x8x16xf32, #tpu.memory_space<vmem>>, %arg3: memref<16x32xbf16, #tpu.memory_space<vmem>>, %arg4: memref<1x32xf32, #tpu.memory_space<vmem>>, %arg5: memref<16x96xbf16, #tpu.memory_space<vmem>>, %arg6: memref<1x96xf32, #tpu.memory_space<vmem>>, %arg7: memref<32x96xbf16, #tpu.memory_space<vmem>>, %arg8: memref<1x32xf32, #tpu.memory_space<vmem>>, %arg9: memref<1x16x4xf32, #tpu.memory_space<vmem>>, %arg10: memref<8x2x32xf32, #tpu.memory_space<vmem>>) attributes {dimension_semantics = [#tpu.dimension_semantics<parallel>], iteration_bounds = array<i64: 1>, scalar_prefetch = 0 : i64, scratch_operands = 1 : i64, tpu.core_type = #tpu.core_type<tc>, window_params = [{transform_indices = @transform_0, window_bounds = array<i64: 1, 16, 16>}, {transform_indices = @transform_1, window_bounds = array<i64: 1, 8, 16>}, {pipeline_mode = #tpu.pipeline_mode<synchronous>, transform_indices = @transform_2, window_bounds = array<i64: 16, 32>}, {pipeline_mode = #tpu.pipeline_mode<synchronous>, transform_indices = @transform_3, window_bounds = array<i64: 1, 32>}, {pipeline_mode = #tpu.pipeline_mode<synchronous>, transform_indices = @transform_4, window_bounds = array<i64: 16, 96>}, {pipeline_mode = #tpu.pipeline_mode<synchronous>, transform_indices = @transform_5, window_bounds = array<i64: 1, 96>}, {pipeline_mode = #tpu.pipeline_mode<synchronous>, transform_indices = @transform_6, window_bounds = array<i64: 32, 96>}, {pipeline_mode = #tpu.pipeline_mode<synchronous>, transform_indices = @transform_7, window_bounds = array<i64: 1, 32>}, {transform_indices = @transform_8, window_bounds = array<i64: 1, 16, 4>}]} {
    %c0 = arith.constant 0 : index
    %c0_0 = arith.constant 0 : index
    %c0_1 = arith.constant 0 : index
    %0 = vector.load %arg2[%c0, %c0_0, %c0_1] : memref<1x8x16xf32, #tpu.memory_space<vmem>>, vector<1x8x16xf32>
    %1 = vector.shape_cast %0 : vector<1x8x16xf32> to vector<8x16xf32>
    %2 = arith.truncf %1 : vector<8x16xf32> to vector<8x16xbf16>
    %c0_2 = arith.constant 0 : index
    %c0_3 = arith.constant 0 : index
    %3 = vector.load %arg3[%c0_2, %c0_3] : memref<16x32xbf16, #tpu.memory_space<vmem>>, vector<16x32xbf16>
    %cst = arith.constant dense<0.000000e+00> : vector<8x32xf32>
    %4 = tpu.matmul %2, %3, %cst {dimension_numbers = #tpu.dot_dimension_numbers<[1], [0], [0], [1], [0, 0, 1, 1], [], []>} : vector<8x16xbf16>, vector<16x32xbf16>, vector<8x32xf32> -> vector<8x32xf32>
    %c0_4 = arith.constant 0 : index
    %c0_5 = arith.constant 0 : index
    %5 = vector.load %arg4[%c0_4, %c0_5] : memref<1x32xf32, #tpu.memory_space<vmem>>, vector<1x32xf32>
    %6 = vector.broadcast %5 : vector<1x32xf32> to vector<8x32xf32>
    %7 = arith.addf %4, %6 : vector<8x32xf32>
    %8 = math.tanh %7 : vector<8x32xf32>
    %c0_6 = arith.constant 0 : index
    %c0_7 = arith.constant 0 : index
    %c0_8 = arith.constant 0 : index
    %9 = vector.load %arg1[%c0_6, %c0_7, %c0_8] : memref<1x16x16xf32, #tpu.memory_space<vmem>>, vector<1x16x16xf32>
    %10 = vector.shape_cast %9 : vector<1x16x16xf32> to vector<16x16xf32>
    %11 = arith.truncf %10 : vector<16x16xf32> to vector<16x16xbf16>
    %c0_9 = arith.constant 0 : index
    %c0_10 = arith.constant 0 : index
    %12 = vector.load %arg5[%c0_9, %c0_10] : memref<16x96xbf16, #tpu.memory_space<vmem>>, vector<16x96xbf16>
    %cst_11 = arith.constant dense<0.000000e+00> : vector<16x96xf32>
    %13 = tpu.matmul %11, %12, %cst_11 {dimension_numbers = #tpu.dot_dimension_numbers<[1], [0], [0], [1], [0, 0, 1, 1], [], []>} : vector<16x16xbf16>, vector<16x96xbf16>, vector<16x96xf32> -> vector<16x96xf32>
    %c0_12 = arith.constant 0 : index
    %c0_13 = arith.constant 0 : index
    %14 = vector.load %arg6[%c0_12, %c0_13] : memref<1x96xf32, #tpu.memory_space<vmem>>, vector<1x96xf32>
    %15 = vector.broadcast %14 : vector<1x96xf32> to vector<16x96xf32>
    %16 = arith.addf %13, %15 : vector<16x96xf32>
    %c0_14 = arith.constant 0 : index
    %c0_15 = arith.constant 0 : index
    %17 = vector.load %arg7[%c0_14, %c0_15] : memref<32x96xbf16, #tpu.memory_space<vmem>>, vector<32x96xbf16>
    %c0_16 = arith.constant 0 : index
    %c0_17 = arith.constant 0 : index
    %18 = vector.load %arg8[%c0_16, %c0_17] : memref<1x32xf32, #tpu.memory_space<vmem>>, vector<1x32xf32>
    %cst_18 = arith.constant 0.000000e+00 : f32
    %19 = vector.broadcast %cst_18 : f32 to vector<2x32xf32>
    %20 = arith.truncf %19 : vector<2x32xf32> to vector<2x32xbf16>
    %cst_19 = arith.constant dense<0.000000e+00> : vector<2x96xf32>
    %21 = tpu.matmul %20, %17, %cst_19 {dimension_numbers = #tpu.dot_dimension_numbers<[1], [0], [0], [1], [0, 0, 1, 1], [], []>} : vector<2x32xbf16>, vector<32x96xbf16>, vector<2x96xf32> -> vector<2x96xf32>
    %22 = vector.extract_strided_slice %16 {offsets = [0, 0], sizes = [2, 96], strides = [1, 1]} : vector<16x96xf32> to vector<2x96xf32>
    %23 = vector.extract_strided_slice %22 {offsets = [0, 0], sizes = [2, 32], strides = [1, 1]} : vector<2x96xf32> to vector<2x32xf32>
    %24 = vector.extract_strided_slice %21 {offsets = [0, 0], sizes = [2, 32], strides = [1, 1]} : vector<2x96xf32> to vector<2x32xf32>
    %25 = arith.addf %23, %24 : vector<2x32xf32>
    %26 = arith.negf %25 : vector<2x32xf32>
    %27 = math.exp %26 : vector<2x32xf32>
    %cst_20 = arith.constant 1.000000e+00 : f32
    %28 = vector.broadcast %cst_20 : f32 to vector<2x32xf32>
    %29 = arith.addf %28, %27 : vector<2x32xf32>
    %30 = arith.divf %28, %29 : vector<2x32xf32>
    %31 = vector.extract_strided_slice %22 {offsets = [0, 32], sizes = [2, 32], strides = [1, 1]} : vector<2x96xf32> to vector<2x32xf32>
    %32 = vector.extract_strided_slice %21 {offsets = [0, 32], sizes = [2, 32], strides = [1, 1]} : vector<2x96xf32> to vector<2x32xf32>
    %33 = arith.addf %31, %32 : vector<2x32xf32>
    %34 = arith.negf %33 : vector<2x32xf32>
    %35 = math.exp %34 : vector<2x32xf32>
    %cst_21 = arith.constant 1.000000e+00 : f32
    %36 = vector.broadcast %cst_21 : f32 to vector<2x32xf32>
    %37 = arith.addf %36, %35 : vector<2x32xf32>
    %38 = arith.divf %36, %37 : vector<2x32xf32>
    %39 = vector.extract_strided_slice %22 {offsets = [0, 64], sizes = [2, 32], strides = [1, 1]} : vector<2x96xf32> to vector<2x32xf32>
    %40 = vector.extract_strided_slice %21 {offsets = [0, 64], sizes = [2, 32], strides = [1, 1]} : vector<2x96xf32> to vector<2x32xf32>
    %41 = vector.broadcast %18 : vector<1x32xf32> to vector<2x32xf32>
    %42 = arith.addf %40, %41 : vector<2x32xf32>
    %43 = arith.mulf %30, %42 : vector<2x32xf32>
    %44 = arith.addf %39, %43 : vector<2x32xf32>
    %45 = math.tanh %44 : vector<2x32xf32>
    %cst_22 = arith.constant 1.000000e+00 : f32
    %46 = vector.broadcast %cst_22 : f32 to vector<2x32xf32>
    %47 = arith.subf %46, %38 : vector<2x32xf32>
    %48 = arith.mulf %47, %45 : vector<2x32xf32>
    %49 = arith.mulf %38, %19 : vector<2x32xf32>
    %50 = arith.addf %48, %49 : vector<2x32xf32>
    %c0_23 = arith.constant 0 : index
    %c0_24 = arith.constant 0 : index
    %c0_25 = arith.constant 0 : index
    %51 = vector.load %arg10[%c0_23, %c0_24, %c0_25] : memref<8x2x32xf32, #tpu.memory_space<vmem>>, vector<1x2x32xf32>
    %52 = vector.shape_cast %51 : vector<1x2x32xf32> to vector<2x32xf32>
    %53 = vector.shape_cast %50 : vector<2x32xf32> to vector<1x2x32xf32>
    tpu.vector_store %arg10[%c0_23, %c0_24, %c0_25], %53 {strides = array<i32>} : memref<8x2x32xf32, #tpu.memory_space<vmem>>, vector<1x2x32xf32>,
    %54 = arith.truncf %50 : vector<2x32xf32> to vector<2x32xbf16>
    %cst_26 = arith.constant dense<0.000000e+00> : vector<2x96xf32>
    %55 = tpu.matmul %54, %17, %cst_26 {dimension_numbers = #tpu.dot_dimension_numbers<[1], [0], [0], [1], [0, 0, 1, 1], [], []>} : vector<2x32xbf16>, vector<32x96xbf16>, vector<2x96xf32> -> vector<2x96xf32>
    %56 = vector.extract_strided_slice %16 {offsets = [2, 0], sizes = [2, 96], strides = [1, 1]} : vector<16x96xf32> to vector<2x96xf32>
    %57 = vector.extract_strided_slice %56 {offsets = [0, 0], sizes = [2, 32], strides = [1, 1]} : vector<2x96xf32> to vector<2x32xf32>
    %58 = vector.extract_strided_slice %55 {offsets = [0, 0], sizes = [2, 32], strides = [1, 1]} : vector<2x96xf32> to vector<2x32xf32>
    %59 = arith.addf %57, %58 : vector<2x32xf32>
    %60 = arith.negf %59 : vector<2x32xf32>
    %61 = math.exp %60 : vector<2x32xf32>
    %cst_27 = arith.constant 1.000000e+00 : f32
    %62 = vector.broadcast %cst_27 : f32 to vector<2x32xf32>
    %63 = arith.addf %62, %61 : vector<2x32xf32>
    %64 = arith.divf %62, %63 : vector<2x32xf32>
    %65 = vector.extract_strided_slice %56 {offsets = [0, 32], sizes = [2, 32], strides = [1, 1]} : vector<2x96xf32> to vector<2x32xf32>
    %66 = vector.extract_strided_slice %55 {offsets = [0, 32], sizes = [2, 32], strides = [1, 1]} : vector<2x96xf32> to vector<2x32xf32>
    %67 = arith.addf %65, %66 : vector<2x32xf32>
    %68 = arith.negf %67 : vector<2x32xf32>
    %69 = math.exp %68 : vector<2x32xf32>
    %cst_28 = arith.constant 1.000000e+00 : f32
    %70 = vector.broadcast %cst_28 : f32 to vector<2x32xf32>
    %71 = arith.addf %70, %69 : vector<2x32xf32>
    %72 = arith.divf %70, %71 : vector<2x32xf32>
    %73 = vector.extract_strided_slice %56 {offsets = [0, 64], sizes = [2, 32], strides = [1, 1]} : vector<2x96xf32> to vector<2x32xf32>
    %74 = vector.extract_strided_slice %55 {offsets = [0, 64], sizes = [2, 32], strides = [1, 1]} : vector<2x96xf32> to vector<2x32xf32>
    %75 = vector.broadcast %18 : vector<1x32xf32> to vector<2x32xf32>
    %76 = arith.addf %74, %75 : vector<2x32xf32>
    %77 = arith.mulf %64, %76 : vector<2x32xf32>
    %78 = arith.addf %73, %77 : vector<2x32xf32>
    %79 = math.tanh %78 : vector<2x32xf32>
    %cst_29 = arith.constant 1.000000e+00 : f32
    %80 = vector.broadcast %cst_29 : f32 to vector<2x32xf32>
    %81 = arith.subf %80, %72 : vector<2x32xf32>
    %82 = arith.mulf %81, %79 : vector<2x32xf32>
    %83 = arith.mulf %72, %50 : vector<2x32xf32>
    %84 = arith.addf %82, %83 : vector<2x32xf32>
    %c1 = arith.constant 1 : index
    %c0_30 = arith.constant 0 : index
    %c0_31 = arith.constant 0 : index
    %85 = vector.load %arg10[%c1, %c0_30, %c0_31] : memref<8x2x32xf32, #tpu.memory_space<vmem>>, vector<1x2x32xf32>
    %86 = vector.shape_cast %85 : vector<1x2x32xf32> to vector<2x32xf32>
    %87 = vector.shape_cast %84 : vector<2x32xf32> to vector<1x2x32xf32>
    tpu.vector_store %arg10[%c1, %c0_30, %c0_31], %87 {strides = array<i32>} : memref<8x2x32xf32, #tpu.memory_space<vmem>>, vector<1x2x32xf32>,
    %88 = arith.truncf %84 : vector<2x32xf32> to vector<2x32xbf16>
    %cst_32 = arith.constant dense<0.000000e+00> : vector<2x96xf32>
    %89 = tpu.matmul %88, %17, %cst_32 {dimension_numbers = #tpu.dot_dimension_numbers<[1], [0], [0], [1], [0, 0, 1, 1], [], []>} : vector<2x32xbf16>, vector<32x96xbf16>, vector<2x96xf32> -> vector<2x96xf32>
    %90 = vector.extract_strided_slice %16 {offsets = [4, 0], sizes = [2, 96], strides = [1, 1]} : vector<16x96xf32> to vector<2x96xf32>
    %91 = vector.extract_strided_slice %90 {offsets = [0, 0], sizes = [2, 32], strides = [1, 1]} : vector<2x96xf32> to vector<2x32xf32>
    %92 = vector.extract_strided_slice %89 {offsets = [0, 0], sizes = [2, 32], strides = [1, 1]} : vector<2x96xf32> to vector<2x32xf32>
    %93 = arith.addf %91, %92 : vector<2x32xf32>
    %94 = arith.negf %93 : vector<2x32xf32>
    %95 = math.exp %94 : vector<2x32xf32>
    %cst_33 = arith.constant 1.000000e+00 : f32
    %96 = vector.broadcast %cst_33 : f32 to vector<2x32xf32>
    %97 = arith.addf %96, %95 : vector<2x32xf32>
    %98 = arith.divf %96, %97 : vector<2x32xf32>
    %99 = vector.extract_strided_slice %90 {offsets = [0, 32], sizes = [2, 32], strides = [1, 1]} : vector<2x96xf32> to vector<2x32xf32>
    %100 = vector.extract_strided_slice %89 {offsets = [0, 32], sizes = [2, 32], strides = [1, 1]} : vector<2x96xf32> to vector<2x32xf32>
    %101 = arith.addf %99, %100 : vector<2x32xf32>
    %102 = arith.negf %101 : vector<2x32xf32>
    %103 = math.exp %102 : vector<2x32xf32>
    %cst_34 = arith.constant 1.000000e+00 : f32
    %104 = vector.broadcast %cst_34 : f32 to vector<2x32xf32>
    %105 = arith.addf %104, %103 : vector<2x32xf32>
    %106 = arith.divf %104, %105 : vector<2x32xf32>
    %107 = vector.extract_strided_slice %90 {offsets = [0, 64], sizes = [2, 32], strides = [1, 1]} : vector<2x96xf32> to vector<2x32xf32>
    %108 = vector.extract_strided_slice %89 {offsets = [0, 64], sizes = [2, 32], strides = [1, 1]} : vector<2x96xf32> to vector<2x32xf32>
    %109 = vector.broadcast %18 : vector<1x32xf32> to vector<2x32xf32>
    %110 = arith.addf %108, %109 : vector<2x32xf32>
    %111 = arith.mulf %98, %110 : vector<2x32xf32>
    %112 = arith.addf %107, %111 : vector<2x32xf32>
    %113 = math.tanh %112 : vector<2x32xf32>
    %cst_35 = arith.constant 1.000000e+00 : f32
    %114 = vector.broadcast %cst_35 : f32 to vector<2x32xf32>
    %115 = arith.subf %114, %106 : vector<2x32xf32>
    %116 = arith.mulf %115, %113 : vector<2x32xf32>
    %117 = arith.mulf %106, %84 : vector<2x32xf32>
    %118 = arith.addf %116, %117 : vector<2x32xf32>
    %c2 = arith.constant 2 : index
    %c0_36 = arith.constant 0 : index
    %c0_37 = arith.constant 0 : index
    %119 = vector.load %arg10[%c2, %c0_36, %c0_37] : memref<8x2x32xf32, #tpu.memory_space<vmem>>, vector<1x2x32xf32>
    %120 = vector.shape_cast %119 : vector<1x2x32xf32> to vector<2x32xf32>
    %121 = vector.shape_cast %118 : vector<2x32xf32> to vector<1x2x32xf32>
    tpu.vector_store %arg10[%c2, %c0_36, %c0_37], %121 {strides = array<i32>} : memref<8x2x32xf32, #tpu.memory_space<vmem>>, vector<1x2x32xf32>,
    %122 = arith.truncf %118 : vector<2x32xf32> to vector<2x32xbf16>
    %cst_38 = arith.constant dense<0.000000e+00> : vector<2x96xf32>
    %123 = tpu.matmul %122, %17, %cst_38 {dimension_numbers = #tpu.dot_dimension_numbers<[1], [0], [0], [1], [0, 0, 1, 1], [], []>} : vector<2x32xbf16>, vector<32x96xbf16>, vector<2x96xf32> -> vector<2x96xf32>
    %124 = vector.extract_strided_slice %16 {offsets = [6, 0], sizes = [2, 96], strides = [1, 1]} : vector<16x96xf32> to vector<2x96xf32>
    %125 = vector.extract_strided_slice %124 {offsets = [0, 0], sizes = [2, 32], strides = [1, 1]} : vector<2x96xf32> to vector<2x32xf32>
    %126 = vector.extract_strided_slice %123 {offsets = [0, 0], sizes = [2, 32], strides = [1, 1]} : vector<2x96xf32> to vector<2x32xf32>
    %127 = arith.addf %125, %126 : vector<2x32xf32>
    %128 = arith.negf %127 : vector<2x32xf32>
    %129 = math.exp %128 : vector<2x32xf32>
    %cst_39 = arith.constant 1.000000e+00 : f32
    %130 = vector.broadcast %cst_39 : f32 to vector<2x32xf32>
    %131 = arith.addf %130, %129 : vector<2x32xf32>
    %132 = arith.divf %130, %131 : vector<2x32xf32>
    %133 = vector.extract_strided_slice %124 {offsets = [0, 32], sizes = [2, 32], strides = [1, 1]} : vector<2x96xf32> to vector<2x32xf32>
    %134 = vector.extract_strided_slice %123 {offsets = [0, 32], sizes = [2, 32], strides = [1, 1]} : vector<2x96xf32> to vector<2x32xf32>
    %135 = arith.addf %133, %134 : vector<2x32xf32>
    %136 = arith.negf %135 : vector<2x32xf32>
    %137 = math.exp %136 : vector<2x32xf32>
    %cst_40 = arith.constant 1.000000e+00 : f32
    %138 = vector.broadcast %cst_40 : f32 to vector<2x32xf32>
    %139 = arith.addf %138, %137 : vector<2x32xf32>
    %140 = arith.divf %138, %139 : vector<2x32xf32>
    %141 = vector.extract_strided_slice %124 {offsets = [0, 64], sizes = [2, 32], strides = [1, 1]} : vector<2x96xf32> to vector<2x32xf32>
    %142 = vector.extract_strided_slice %123 {offsets = [0, 64], sizes = [2, 32], strides = [1, 1]} : vector<2x96xf32> to vector<2x32xf32>
    %143 = vector.broadcast %18 : vector<1x32xf32> to vector<2x32xf32>
    %144 = arith.addf %142, %143 : vector<2x32xf32>
    %145 = arith.mulf %132, %144 : vector<2x32xf32>
    %146 = arith.addf %141, %145 : vector<2x32xf32>
    %147 = math.tanh %146 : vector<2x32xf32>
    %cst_41 = arith.constant 1.000000e+00 : f32
    %148 = vector.broadcast %cst_41 : f32 to vector<2x32xf32>
    %149 = arith.subf %148, %140 : vector<2x32xf32>
    %150 = arith.mulf %149, %147 : vector<2x32xf32>
    %151 = arith.mulf %140, %118 : vector<2x32xf32>
    %152 = arith.addf %150, %151 : vector<2x32xf32>
    %c3 = arith.constant 3 : index
    %c0_42 = arith.constant 0 : index
    %c0_43 = arith.constant 0 : index
    %153 = vector.load %arg10[%c3, %c0_42, %c0_43] : memref<8x2x32xf32, #tpu.memory_space<vmem>>, vector<1x2x32xf32>
    %154 = vector.shape_cast %153 : vector<1x2x32xf32> to vector<2x32xf32>
    %155 = vector.shape_cast %152 : vector<2x32xf32> to vector<1x2x32xf32>
    tpu.vector_store %arg10[%c3, %c0_42, %c0_43], %155 {strides = array<i32>} : memref<8x2x32xf32, #tpu.memory_space<vmem>>, vector<1x2x32xf32>,
    %156 = arith.truncf %152 : vector<2x32xf32> to vector<2x32xbf16>
    %cst_44 = arith.constant dense<0.000000e+00> : vector<2x96xf32>
    %157 = tpu.matmul %156, %17, %cst_44 {dimension_numbers = #tpu.dot_dimension_numbers<[1], [0], [0], [1], [0, 0, 1, 1], [], []>} : vector<2x32xbf16>, vector<32x96xbf16>, vector<2x96xf32> -> vector<2x96xf32>
    %158 = vector.extract_strided_slice %16 {offsets = [8, 0], sizes = [2, 96], strides = [1, 1]} : vector<16x96xf32> to vector<2x96xf32>
    %159 = vector.extract_strided_slice %158 {offsets = [0, 0], sizes = [2, 32], strides = [1, 1]} : vector<2x96xf32> to vector<2x32xf32>
    %160 = vector.extract_strided_slice %157 {offsets = [0, 0], sizes = [2, 32], strides = [1, 1]} : vector<2x96xf32> to vector<2x32xf32>
    %161 = arith.addf %159, %160 : vector<2x32xf32>
    %162 = arith.negf %161 : vector<2x32xf32>
    %163 = math.exp %162 : vector<2x32xf32>
    %cst_45 = arith.constant 1.000000e+00 : f32
    %164 = vector.broadcast %cst_45 : f32 to vector<2x32xf32>
    %165 = arith.addf %164, %163 : vector<2x32xf32>
    %166 = arith.divf %164, %165 : vector<2x32xf32>
    %167 = vector.extract_strided_slice %158 {offsets = [0, 32], sizes = [2, 32], strides = [1, 1]} : vector<2x96xf32> to vector<2x32xf32>
    %168 = vector.extract_strided_slice %157 {offsets = [0, 32], sizes = [2, 32], strides = [1, 1]} : vector<2x96xf32> to vector<2x32xf32>
    %169 = arith.addf %167, %168 : vector<2x32xf32>
    %170 = arith.negf %169 : vector<2x32xf32>
    %171 = math.exp %170 : vector<2x32xf32>
    %cst_46 = arith.constant 1.000000e+00 : f32
    %172 = vector.broadcast %cst_46 : f32 to vector<2x32xf32>
    %173 = arith.addf %172, %171 : vector<2x32xf32>
    %174 = arith.divf %172, %173 : vector<2x32xf32>
    %175 = vector.extract_strided_slice %158 {offsets = [0, 64], sizes = [2, 32], strides = [1, 1]} : vector<2x96xf32> to vector<2x32xf32>
    %176 = vector.extract_strided_slice %157 {offsets = [0, 64], sizes = [2, 32], strides = [1, 1]} : vector<2x96xf32> to vector<2x32xf32>
    %177 = vector.broadcast %18 : vector<1x32xf32> to vector<2x32xf32>
    %178 = arith.addf %176, %177 : vector<2x32xf32>
    %179 = arith.mulf %166, %178 : vector<2x32xf32>
    %180 = arith.addf %175, %179 : vector<2x32xf32>
    %181 = math.tanh %180 : vector<2x32xf32>
    %cst_47 = arith.constant 1.000000e+00 : f32
    %182 = vector.broadcast %cst_47 : f32 to vector<2x32xf32>
    %183 = arith.subf %182, %174 : vector<2x32xf32>
    %184 = arith.mulf %183, %181 : vector<2x32xf32>
    %185 = arith.mulf %174, %152 : vector<2x32xf32>
    %186 = arith.addf %184, %185 : vector<2x32xf32>
    %c4 = arith.constant 4 : index
    %c0_48 = arith.constant 0 : index
    %c0_49 = arith.constant 0 : index
    %187 = vector.load %arg10[%c4, %c0_48, %c0_49] : memref<8x2x32xf32, #tpu.memory_space<vmem>>, vector<1x2x32xf32>
    %188 = vector.shape_cast %187 : vector<1x2x32xf32> to vector<2x32xf32>
    %189 = vector.shape_cast %186 : vector<2x32xf32> to vector<1x2x32xf32>
    tpu.vector_store %arg10[%c4, %c0_48, %c0_49], %189 {strides = array<i32>} : memref<8x2x32xf32, #tpu.memory_space<vmem>>, vector<1x2x32xf32>,
    %190 = arith.truncf %186 : vector<2x32xf32> to vector<2x32xbf16>
    %cst_50 = arith.constant dense<0.000000e+00> : vector<2x96xf32>
    %191 = tpu.matmul %190, %17, %cst_50 {dimension_numbers = #tpu.dot_dimension_numbers<[1], [0], [0], [1], [0, 0, 1, 1], [], []>} : vector<2x32xbf16>, vector<32x96xbf16>, vector<2x96xf32> -> vector<2x96xf32>
    %192 = vector.extract_strided_slice %16 {offsets = [10, 0], sizes = [2, 96], strides = [1, 1]} : vector<16x96xf32> to vector<2x96xf32>
    %193 = vector.extract_strided_slice %192 {offsets = [0, 0], sizes = [2, 32], strides = [1, 1]} : vector<2x96xf32> to vector<2x32xf32>
    %194 = vector.extract_strided_slice %191 {offsets = [0, 0], sizes = [2, 32], strides = [1, 1]} : vector<2x96xf32> to vector<2x32xf32>
    %195 = arith.addf %193, %194 : vector<2x32xf32>
    %196 = arith.negf %195 : vector<2x32xf32>
    %197 = math.exp %196 : vector<2x32xf32>
    %cst_51 = arith.constant 1.000000e+00 : f32
    %198 = vector.broadcast %cst_51 : f32 to vector<2x32xf32>
    %199 = arith.addf %198, %197 : vector<2x32xf32>
    %200 = arith.divf %198, %199 : vector<2x32xf32>
    %201 = vector.extract_strided_slice %192 {offsets = [0, 32], sizes = [2, 32], strides = [1, 1]} : vector<2x96xf32> to vector<2x32xf32>
    %202 = vector.extract_strided_slice %191 {offsets = [0, 32], sizes = [2, 32], strides = [1, 1]} : vector<2x96xf32> to vector<2x32xf32>
    %203 = arith.addf %201, %202 : vector<2x32xf32>
    %204 = arith.negf %203 : vector<2x32xf32>
    %205 = math.exp %204 : vector<2x32xf32>
    %cst_52 = arith.constant 1.000000e+00 : f32
    %206 = vector.broadcast %cst_52 : f32 to vector<2x32xf32>
    %207 = arith.addf %206, %205 : vector<2x32xf32>
    %208 = arith.divf %206, %207 : vector<2x32xf32>
    %209 = vector.extract_strided_slice %192 {offsets = [0, 64], sizes = [2, 32], strides = [1, 1]} : vector<2x96xf32> to vector<2x32xf32>
    %210 = vector.extract_strided_slice %191 {offsets = [0, 64], sizes = [2, 32], strides = [1, 1]} : vector<2x96xf32> to vector<2x32xf32>
    %211 = vector.broadcast %18 : vector<1x32xf32> to vector<2x32xf32>
    %212 = arith.addf %210, %211 : vector<2x32xf32>
    %213 = arith.mulf %200, %212 : vector<2x32xf32>
    %214 = arith.addf %209, %213 : vector<2x32xf32>
    %215 = math.tanh %214 : vector<2x32xf32>
    %cst_53 = arith.constant 1.000000e+00 : f32
    %216 = vector.broadcast %cst_53 : f32 to vector<2x32xf32>
    %217 = arith.subf %216, %208 : vector<2x32xf32>
    %218 = arith.mulf %217, %215 : vector<2x32xf32>
    %219 = arith.mulf %208, %186 : vector<2x32xf32>
    %220 = arith.addf %218, %219 : vector<2x32xf32>
    %c5 = arith.constant 5 : index
    %c0_54 = arith.constant 0 : index
    %c0_55 = arith.constant 0 : index
    %221 = vector.load %arg10[%c5, %c0_54, %c0_55] : memref<8x2x32xf32, #tpu.memory_space<vmem>>, vector<1x2x32xf32>
    %222 = vector.shape_cast %221 : vector<1x2x32xf32> to vector<2x32xf32>
    %223 = vector.shape_cast %220 : vector<2x32xf32> to vector<1x2x32xf32>
    tpu.vector_store %arg10[%c5, %c0_54, %c0_55], %223 {strides = array<i32>} : memref<8x2x32xf32, #tpu.memory_space<vmem>>, vector<1x2x32xf32>,
    %224 = arith.truncf %220 : vector<2x32xf32> to vector<2x32xbf16>
    %cst_56 = arith.constant dense<0.000000e+00> : vector<2x96xf32>
    %225 = tpu.matmul %224, %17, %cst_56 {dimension_numbers = #tpu.dot_dimension_numbers<[1], [0], [0], [1], [0, 0, 1, 1], [], []>} : vector<2x32xbf16>, vector<32x96xbf16>, vector<2x96xf32> -> vector<2x96xf32>
    %226 = vector.extract_strided_slice %16 {offsets = [12, 0], sizes = [2, 96], strides = [1, 1]} : vector<16x96xf32> to vector<2x96xf32>
    %227 = vector.extract_strided_slice %226 {offsets = [0, 0], sizes = [2, 32], strides = [1, 1]} : vector<2x96xf32> to vector<2x32xf32>
    %228 = vector.extract_strided_slice %225 {offsets = [0, 0], sizes = [2, 32], strides = [1, 1]} : vector<2x96xf32> to vector<2x32xf32>
    %229 = arith.addf %227, %228 : vector<2x32xf32>
    %230 = arith.negf %229 : vector<2x32xf32>
    %231 = math.exp %230 : vector<2x32xf32>
    %cst_57 = arith.constant 1.000000e+00 : f32
    %232 = vector.broadcast %cst_57 : f32 to vector<2x32xf32>
    %233 = arith.addf %232, %231 : vector<2x32xf32>
    %234 = arith.divf %232, %233 : vector<2x32xf32>
    %235 = vector.extract_strided_slice %226 {offsets = [0, 32], sizes = [2, 32], strides = [1, 1]} : vector<2x96xf32> to vector<2x32xf32>
    %236 = vector.extract_strided_slice %225 {offsets = [0, 32], sizes = [2, 32], strides = [1, 1]} : vector<2x96xf32> to vector<2x32xf32>
    %237 = arith.addf %235, %236 : vector<2x32xf32>
    %238 = arith.negf %237 : vector<2x32xf32>
    %239 = math.exp %238 : vector<2x32xf32>
    %cst_58 = arith.constant 1.000000e+00 : f32
    %240 = vector.broadcast %cst_58 : f32 to vector<2x32xf32>
    %241 = arith.addf %240, %239 : vector<2x32xf32>
    %242 = arith.divf %240, %241 : vector<2x32xf32>
    %243 = vector.extract_strided_slice %226 {offsets = [0, 64], sizes = [2, 32], strides = [1, 1]} : vector<2x96xf32> to vector<2x32xf32>
    %244 = vector.extract_strided_slice %225 {offsets = [0, 64], sizes = [2, 32], strides = [1, 1]} : vector<2x96xf32> to vector<2x32xf32>
    %245 = vector.broadcast %18 : vector<1x32xf32> to vector<2x32xf32>
    %246 = arith.addf %244, %245 : vector<2x32xf32>
    %247 = arith.mulf %234, %246 : vector<2x32xf32>
    %248 = arith.addf %243, %247 : vector<2x32xf32>
    %249 = math.tanh %248 : vector<2x32xf32>
    %cst_59 = arith.constant 1.000000e+00 : f32
    %250 = vector.broadcast %cst_59 : f32 to vector<2x32xf32>
    %251 = arith.subf %250, %242 : vector<2x32xf32>
    %252 = arith.mulf %251, %249 : vector<2x32xf32>
    %253 = arith.mulf %242, %220 : vector<2x32xf32>
    %254 = arith.addf %252, %253 : vector<2x32xf32>
    %c6 = arith.constant 6 : index
    %c0_60 = arith.constant 0 : index
    %c0_61 = arith.constant 0 : index
    %255 = vector.load %arg10[%c6, %c0_60, %c0_61] : memref<8x2x32xf32, #tpu.memory_space<vmem>>, vector<1x2x32xf32>
    %256 = vector.shape_cast %255 : vector<1x2x32xf32> to vector<2x32xf32>
    %257 = vector.shape_cast %254 : vector<2x32xf32> to vector<1x2x32xf32>
    tpu.vector_store %arg10[%c6, %c0_60, %c0_61], %257 {strides = array<i32>} : memref<8x2x32xf32, #tpu.memory_space<vmem>>, vector<1x2x32xf32>,
    %258 = arith.truncf %254 : vector<2x32xf32> to vector<2x32xbf16>
    %cst_62 = arith.constant dense<0.000000e+00> : vector<2x96xf32>
    %259 = tpu.matmul %258, %17, %cst_62 {dimension_numbers = #tpu.dot_dimension_numbers<[1], [0], [0], [1], [0, 0, 1, 1], [], []>} : vector<2x32xbf16>, vector<32x96xbf16>, vector<2x96xf32> -> vector<2x96xf32>
    %260 = vector.extract_strided_slice %16 {offsets = [14, 0], sizes = [2, 96], strides = [1, 1]} : vector<16x96xf32> to vector<2x96xf32>
    %261 = vector.extract_strided_slice %260 {offsets = [0, 0], sizes = [2, 32], strides = [1, 1]} : vector<2x96xf32> to vector<2x32xf32>
    %262 = vector.extract_strided_slice %259 {offsets = [0, 0], sizes = [2, 32], strides = [1, 1]} : vector<2x96xf32> to vector<2x32xf32>
    %263 = arith.addf %261, %262 : vector<2x32xf32>
    %264 = arith.negf %263 : vector<2x32xf32>
    %265 = math.exp %264 : vector<2x32xf32>
    %cst_63 = arith.constant 1.000000e+00 : f32
    %266 = vector.broadcast %cst_63 : f32 to vector<2x32xf32>
    %267 = arith.addf %266, %265 : vector<2x32xf32>
    %268 = arith.divf %266, %267 : vector<2x32xf32>
    %269 = vector.extract_strided_slice %260 {offsets = [0, 32], sizes = [2, 32], strides = [1, 1]} : vector<2x96xf32> to vector<2x32xf32>
    %270 = vector.extract_strided_slice %259 {offsets = [0, 32], sizes = [2, 32], strides = [1, 1]} : vector<2x96xf32> to vector<2x32xf32>
    %271 = arith.addf %269, %270 : vector<2x32xf32>
    %272 = arith.negf %271 : vector<2x32xf32>
    %273 = math.exp %272 : vector<2x32xf32>
    %cst_64 = arith.constant 1.000000e+00 : f32
    %274 = vector.broadcast %cst_64 : f32 to vector<2x32xf32>
    %275 = arith.addf %274, %273 : vector<2x32xf32>
    %276 = arith.divf %274, %275 : vector<2x32xf32>
    %277 = vector.extract_strided_slice %260 {offsets = [0, 64], sizes = [2, 32], strides = [1, 1]} : vector<2x96xf32> to vector<2x32xf32>
    %278 = vector.extract_strided_slice %259 {offsets = [0, 64], sizes = [2, 32], strides = [1, 1]} : vector<2x96xf32> to vector<2x32xf32>
    %279 = vector.broadcast %18 : vector<1x32xf32> to vector<2x32xf32>
    %280 = arith.addf %278, %279 : vector<2x32xf32>
    %281 = arith.mulf %268, %280 : vector<2x32xf32>
    %282 = arith.addf %277, %281 : vector<2x32xf32>
    %283 = math.tanh %282 : vector<2x32xf32>
    %cst_65 = arith.constant 1.000000e+00 : f32
    %284 = vector.broadcast %cst_65 : f32 to vector<2x32xf32>
    %285 = arith.subf %284, %276 : vector<2x32xf32>
    %286 = arith.mulf %285, %283 : vector<2x32xf32>
    %287 = arith.mulf %276, %254 : vector<2x32xf32>
    %288 = arith.addf %286, %287 : vector<2x32xf32>
    %c7 = arith.constant 7 : index
    %c0_66 = arith.constant 0 : index
    %c0_67 = arith.constant 0 : index
    %289 = vector.load %arg10[%c7, %c0_66, %c0_67] : memref<8x2x32xf32, #tpu.memory_space<vmem>>, vector<1x2x32xf32>
    %290 = vector.shape_cast %289 : vector<1x2x32xf32> to vector<2x32xf32>
    %291 = vector.shape_cast %288 : vector<2x32xf32> to vector<1x2x32xf32>
    tpu.vector_store %arg10[%c7, %c0_66, %c0_67], %291 {strides = array<i32>} : memref<8x2x32xf32, #tpu.memory_space<vmem>>, vector<1x2x32xf32>,
    %c0_68 = arith.constant 0 : index
    %c0_69 = arith.constant 0 : index
    %c0_70 = arith.constant 0 : index
    %292 = vector.load %arg10[%c0_68, %c0_69, %c0_70] : memref<8x2x32xf32, #tpu.memory_space<vmem>>, vector<8x1x32xf32>
    %293 = vector.shape_cast %292 : vector<8x1x32xf32> to vector<8x32xf32>
    %294 = vector.extract_strided_slice %8 {offsets = [0, 0], sizes = [4, 32], strides = [1, 1]} : vector<8x32xf32> to vector<4x32xf32>
    %295 = arith.truncf %293 : vector<8x32xf32> to vector<8x32xbf16>
    %296 = arith.truncf %294 : vector<4x32xf32> to vector<4x32xbf16>
    %cst_71 = arith.constant dense<0.000000e+00> : vector<8x4xf32>
    %297 = tpu.matmul %295, %296, %cst_71 {dimension_numbers = #tpu.dot_dimension_numbers<[1], [1], [0], [0], [0, 0, 1, 0], [], []>} : vector<8x32xbf16>, vector<4x32xbf16>, vector<8x4xf32> -> vector<8x4xf32>
    %c0_72 = arith.constant 0 : index
    %c1_73 = arith.constant 1 : index
    %c0_74 = arith.constant 0 : index
    %298 = vector.load %arg10[%c0_72, %c1_73, %c0_74] : memref<8x2x32xf32, #tpu.memory_space<vmem>>, vector<8x1x32xf32>
    %299 = vector.shape_cast %298 : vector<8x1x32xf32> to vector<8x32xf32>
    %300 = vector.extract_strided_slice %8 {offsets = [4, 0], sizes = [4, 32], strides = [1, 1]} : vector<8x32xf32> to vector<4x32xf32>
    %301 = arith.truncf %299 : vector<8x32xf32> to vector<8x32xbf16>
    %302 = arith.truncf %300 : vector<4x32xf32> to vector<4x32xbf16>
    %cst_75 = arith.constant dense<0.000000e+00> : vector<8x4xf32>
    %303 = tpu.matmul %301, %302, %cst_75 {dimension_numbers = #tpu.dot_dimension_numbers<[1], [1], [0], [0], [0, 0, 1, 0], [], []>} : vector<8x32xbf16>, vector<4x32xbf16>, vector<8x4xf32> -> vector<8x4xf32>
    %304 = tpu.concatenate %297, %303 in 0 : vector<8x4xf32>, vector<8x4xf32> -> vector<16x4xf32>
    %cst_76 = arith.constant dense<0xFF800000> : vector<16xf32>
    %305 = vector.multi_reduction <maximumf>, %304, %cst_76 [1] : vector<16x4xf32> to vector<16xf32>
    %306 = vector.shape_cast %305 : vector<16xf32> to vector<16x1xf32>
    %307 = vector.broadcast %306 : vector<16x1xf32> to vector<16x4xf32>
    %308 = arith.subf %304, %307 : vector<16x4xf32>
    %309 = math.exp %308 : vector<16x4xf32>
    %cst_77 = arith.constant dense<0.000000e+00> : vector<16xf32>
    %310 = vector.multi_reduction <add>, %309, %cst_77 [1] : vector<16x4xf32> to vector<16xf32>
    %311 = vector.shape_cast %310 : vector<16xf32> to vector<16x1xf32>
    %312 = math.log %311 : vector<16x1xf32>
    %313 = arith.addf %306, %312 : vector<16x1xf32>
    %314 = vector.broadcast %313 : vector<16x1xf32> to vector<16x4xf32>
    %315 = arith.subf %304, %314 : vector<16x4xf32>
    %c0_78 = arith.constant 0 : index
    %c0_79 = arith.constant 0 : index
    %c0_80 = arith.constant 0 : index
    %316 = vector.load %arg9[%c0_78, %c0_79, %c0_80] : memref<1x16x4xf32, #tpu.memory_space<vmem>>, vector<1x16x4xf32>
    %317 = vector.shape_cast %316 : vector<1x16x4xf32> to vector<16x4xf32>
    %318 = vector.shape_cast %315 : vector<16x4xf32> to vector<1x16x4xf32>
    tpu.vector_store %arg9[%c0_78, %c0_79, %c0_80], %318 {strides = array<i32>} : memref<1x16x4xf32, #tpu.memory_space<vmem>>, vector<1x16x4xf32>,
    return
  }
  func.func @transform_0(%arg0: i32) -> (i32, i32, i32) {
    %c0_i32 = arith.constant 0 : i32
    %c0_i32_0 = arith.constant 0 : i32
    %c0_i32_1 = arith.constant 0 : i32
    return %arg0, %c0_i32, %c0_i32_0 : i32, i32, i32
  }
  func.func @transform_1(%arg0: i32) -> (i32, i32, i32) {
    %c0_i32 = arith.constant 0 : i32
    %c0_i32_0 = arith.constant 0 : i32
    %c0_i32_1 = arith.constant 0 : i32
    return %arg0, %c0_i32, %c0_i32_0 : i32, i32, i32
  }
  func.func @transform_2(%arg0: i32) -> (i32, i32) {
    %c0_i32 = arith.constant 0 : i32
    %c0_i32_0 = arith.constant 0 : i32
    %c0_i32_1 = arith.constant 0 : i32
    return %c0_i32, %c0_i32_0 : i32, i32
  }
  func.func @transform_3(%arg0: i32) -> (i32, i32) {
    %c0_i32 = arith.constant 0 : i32
    %c0_i32_0 = arith.constant 0 : i32
    %c0_i32_1 = arith.constant 0 : i32
    return %c0_i32, %c0_i32_0 : i32, i32
  }
  func.func @transform_4(%arg0: i32) -> (i32, i32) {
    %c0_i32 = arith.constant 0 : i32
    %c0_i32_0 = arith.constant 0 : i32
    %c0_i32_1 = arith.constant 0 : i32
    return %c0_i32, %c0_i32_0 : i32, i32
  }
  func.func @transform_5(%arg0: i32) -> (i32, i32) {
    %c0_i32 = arith.constant 0 : i32
    %c0_i32_0 = arith.constant 0 : i32
    %c0_i32_1 = arith.constant 0 : i32
    return %c0_i32, %c0_i32_0 : i32, i32
  }
  func.func @transform_6(%arg0: i32) -> (i32, i32) {
    %c0_i32 = arith.constant 0 : i32
    %c0_i32_0 = arith.constant 0 : i32
    %c0_i32_1 = arith.constant 0 : i32
    return %c0_i32, %c0_i32_0 : i32, i32
  }
  func.func @transform_7(%arg0: i32) -> (i32, i32) {
    %c0_i32 = arith.constant 0 : i32
    %c0_i32_0 = arith.constant 0 : i32
    %c0_i32_1 = arith.constant 0 : i32
    return %c0_i32, %c0_i32_0 : i32, i32
  }
  func.func @transform_8(%arg0: i32) -> (i32, i32, i32) {
    %c0_i32 = arith.constant 0 : i32
    %c0_i32_0 = arith.constant 0 : i32
    %c0_i32_1 = arith.constant 0 : i32
    return %arg0, %c0_i32, %c0_i32_0 : i32, i32, i32
  }
}

</mosaic_0001>

<llo_original>
// kernel: tpu_custom_call.1
$region0: #{tpu_custom_call.1}
  #allocation0 [shape = 'u32[]', space=smem, size = 0x4, offset = 0x4, fixed_abs, tag = 'smem constant byte address 0x4 - core index']
  #allocation1 [shape = 'u32[144,128]{1,0:T(1,128)}', space=vmem, size = 0x12000, scoped, tag = 'internal scratch']
  #allocation2 [shape = 'f32[8,2,32]{2,1,0:T(2,128)}', space=vmem, size = 0x2000, scoped, tag = 'scratch operand']
  %s0 = inlined_call_operand.hbm [shape: f32[1,16,16], index: 0, kind: input, shape index: {}]
  %s1 = inlined_call_operand.hbm [shape: f32[1,8,16], index: 1, kind: input, shape index: {}]
  %s2 = inlined_call_operand.hbm [shape: bf16[16,32], index: 2, kind: input, shape index: {}]
  %s3 = inlined_call_operand.vmem [shape: f32[1,32], index: 3, kind: input, shape index: {}]
  %s4 = inlined_call_operand.hbm [shape: bf16[16,96], index: 4, kind: input, shape index: {}]
  %s5 = inlined_call_operand.vmem [shape: f32[1,96], index: 5, kind: input, shape index: {}]
  %s6 = inlined_call_operand.hbm [shape: bf16[32,96], index: 6, kind: input, shape index: {}]
  %s7 = inlined_call_operand.vmem [shape: f32[1,32], index: 7, kind: input, shape index: {}]
  %s8 = inlined_call_operand.vmem [shape: f32[1,16,4], index: 8, kind: output, shape index: {}]
  %s9 = sld [smem:[#allocation0]]
  $region62: #{tpu_custom_call.1} parent=0
    _
  %s11 = ssub.s32 1, %s9
  %s12 = scalar_select 0, %s11, %s9
  $region1: #{tpu_custom_call.1} parent=0
    #allocation3 [shape = 'u8[8192]{0}', space=vmem, size = 0x2000, scoped, tag = 'input window, operand 0, single buffered']
    #allocation4 [shape = 's32[1]{0}', space=sflag, size = 0x4, scoped, tag = 'scoped memory for tpu_custom_call.1']
    #allocation5 [shape = 'u8[4096]{0}', space=vmem, size = 0x1000, scoped, tag = 'input window, operand 1, single buffered']
    #allocation6 [shape = 's32[1]{0}', space=sflag, size = 0x4, scoped, tag = 'scoped memory for tpu_custom_call.1']
    #allocation7 [shape = 'u8[4096]{0}', space=vmem, size = 0x1000, scoped, tag = 'input window, operand 2, single buffered']
    #allocation8 [shape = 'u8[4096]{0}', space=vmem, size = 0x1000, scoped, tag = 'input window, operand 4, single buffered']
    #allocation9 [shape = 's32[1]{0}', space=sflag, size = 0x4, scoped, tag = 'scoped memory for tpu_custom_call.1']
    #allocation10 [shape = 'u8[8192]{0}', space=vmem, size = 0x2000, scoped, tag = 'input window, operand 6, single buffered']
    %13 = vsyncpa [#allocation4], 0
    %14 = vsyncpa [#allocation6], 0
    %15 = vsyncpa [#allocation9], 0
    // Predicated region
    $region2: #{tpu_custom_call.1} parent=1 // pred_check
      _
    $region3: #{tpu_custom_call.1} parent=1 // pred_check_branch
      %17 = sbr.rel (0) target = $region5
    $region4: #{tpu_custom_call.1} parent=1 // pred_region
      %s19 = ssub.s32 256, 256
      %20 = vsyncadd [#allocation4], %s19
      %s21 = sshll.u32 [#allocation3], 4
      %s22 = int_to_ptr.vmem [resolvable:$true] %s21
      %27 = dma.hbm_to_vmem [thread:$0]  %s0, 256, %s22, [#allocation4], 128, 128, 8
    $region5: #{tpu_custom_call.1} parent=1 // pred_fallthru
      _
    // Predicated region
    $region6: #{tpu_custom_call.1} parent=1 // pred_check
      _
    $region7: #{tpu_custom_call.1} parent=1 // pred_check_branch
      %29 = sbr.rel (0) target = $region9
    $region8: #{tpu_custom_call.1} parent=1 // pred_region
      %s31 = ssub.s32 128, 128
      %32 = vsyncadd [#allocation6], %s31
      %s34 = sshll.u32 [#allocation5], 4
      %s35 = int_to_ptr.vmem [resolvable:$true] %s34
      %37 = dma.hbm_to_vmem [thread:$0]  %s1, 128, %s35, [#allocation6]
    $region9: #{tpu_custom_call.1} parent=1 // pred_fallthru
      _
    // Predicated region
    $region10: #{tpu_custom_call.1} parent=1 // pred_check
      _
    $region11: #{tpu_custom_call.1} parent=1 // pred_check_branch
      %39 = sbr.rel (0) target = $region13
    $region12: #{tpu_custom_call.1} parent=1 // pred_region
      %s41 = ssub.s32 128, 128
      %42 = vsyncadd [#allocation6], %s41
      %s43 = sshll.u32 [#allocation7], 4
      %s44 = int_to_ptr.vmem [resolvable:$true] %s43
      %49 = dma.hbm_to_vmem [thread:$0]  %s2, 128, %s44, [#allocation6], 64, 64, 4
    $region13: #{tpu_custom_call.1} parent=1 // pred_fallthru
      _
    // Predicated region
    $region14: #{tpu_custom_call.1} parent=1 // pred_check
      _
    $region15: #{tpu_custom_call.1} parent=1 // pred_check_branch
      %51 = sbr.rel (0) target = $region17
    $region16: #{tpu_custom_call.1} parent=1 // pred_region
      _
    $region17: #{tpu_custom_call.1} parent=1 // pred_fallthru
      _
    // Predicated region
    $region18: #{tpu_custom_call.1} parent=1 // pred_check
      _
    $region19: #{tpu_custom_call.1} parent=1 // pred_check_branch
      %53 = sbr.rel (0) target = $region21
    $region20: #{tpu_custom_call.1} parent=1 // pred_region
      %s55 = ssub.s32 128, 128
      %56 = vsyncadd [#allocation9], %s55
      %s57 = sshll.u32 [#allocation8], 4
      %s58 = int_to_ptr.vmem [resolvable:$true] %s57
      %63 = dma.hbm_to_vmem [thread:$0]  %s4, 128, %s58, [#allocation9], 64, 64, 4
    $region21: #{tpu_custom_call.1} parent=1 // pred_fallthru
      _
    // Predicated region
    $region22: #{tpu_custom_call.1} parent=1 // pred_check
      _
    $region23: #{tpu_custom_call.1} parent=1 // pred_check_branch
      %65 = sbr.rel (0) target = $region25
    $region24: #{tpu_custom_call.1} parent=1 // pred_region
      _
    $region25: #{tpu_custom_call.1} parent=1 // pred_fallthru
      _
    // Predicated region
    $region26: #{tpu_custom_call.1} parent=1 // pred_check
      _
    $region27: #{tpu_custom_call.1} parent=1 // pred_check_branch
      %67 = sbr.rel (0) target = $region29
    $region28: #{tpu_custom_call.1} parent=1 // pred_region
      %s69 = ssub.s32 256, 256
      %70 = vsyncadd [#allocation9], %s69
      %s71 = sshll.u32 [#allocation10], 4
      %s72 = int_to_ptr.vmem [resolvable:$true] %s71
      %77 = dma.hbm_to_vmem [thread:$0]  %s6, 256, %s72, [#allocation9], 64, 64, 4
    $region29: #{tpu_custom_call.1} parent=1 // pred_fallthru
      _
    // Predicated region
    $region30: #{tpu_custom_call.1} parent=1 // pred_check
      _
    $region31: #{tpu_custom_call.1} parent=1 // pred_check_branch
      %79 = sbr.rel (0) target = $region33
    $region32: #{tpu_custom_call.1} parent=1 // pred_region
      _
    $region33: #{tpu_custom_call.1} parent=1 // pred_fallthru
      _
    // Predicated region
    $region34: #{tpu_custom_call.1} parent=1 // pred_check
      _
    $region35: #{tpu_custom_call.1} parent=1 // pred_check_branch
      %81 = sbr.rel (0) target = $region37
    $region36: #{tpu_custom_call.1} parent=1 // pred_region
      %82 = dma.done [#allocation4], 256
    $region37: #{tpu_custom_call.1} parent=1 // pred_fallthru
      _
    // Predicated region
    $region38: #{tpu_custom_call.1} parent=1 // pred_check
      _
    $region39: #{tpu_custom_call.1} parent=1 // pred_check_branch
      %84 = sbr.rel (0) target = $region41
    $region40: #{tpu_custom_call.1} parent=1 // pred_region
      %85 = dma.done [#allocation6], 128
    $region41: #{tpu_custom_call.1} parent=1 // pred_fallthru
      _
    // Predicated region
    $region42: #{tpu_custom_call.1} parent=1 // pred_check
      _
    $region43: #{tpu_custom_call.1} parent=1 // pred_check_branch
      %87 = sbr.rel (0) target = $region45
    $region44: #{tpu_custom_call.1} parent=1 // pred_region
      %88 = dma.done [#allocation6], 128
    $region45: #{tpu_custom_call.1} parent=1 // pred_fallthru
      _
    // Predicated region
    $region46: #{tpu_custom_call.1} parent=1 // pred_check
      _
    $region47: #{tpu_custom_call.1} parent=1 // pred_check_branch
      %90 = sbr.rel (0) target = $region49
    $region48: #{tpu_custom_call.1} parent=1 // pred_region
      %91 = dma.done [#allocation9], 128
    $region49: #{tpu_custom_call.1} parent=1 // pred_fallthru
      _
    // Predicated region
    $region50: #{tpu_custom_call.1} parent=1 // pred_check
      _
    $region51: #{tpu_custom_call.1} parent=1 // pred_check_branch
      %93 = sbr.rel (0) target = $region53
    $region52: #{tpu_custom_call.1} parent=1 // pred_region
      %94 = dma.done [#allocation9], 256
    $region53: #{tpu_custom_call.1} parent=1 // pred_fallthru
      _
    %v96 = vld [vmem:[#allocation5] sm:$0xff]
    %v97 = vpack.c.bf16 %v96, %v96
    %v98 = vld [vmem:[#allocation7] sm:$0xf]
    %v99 = vld [vmem:[#allocation7 + $0x4] sm:$0xf]
    %v100 = vld [vmem:[%s3] sm:$0x1]
    %v102 = vlaneseq
    %v103 = vshrl.u32 %v102, 7
    %v104 = vsub.s32 0, %v103
    %v105 = vrot.slane %v100, %v104
    %v109 = vunpack.c.l.b16 %v98
    %v110 = vunpack.c.l.b16 %v99
    %v111 = vpack.c.b16 %v110, %v109
    %vm113 = vcmask 130048
    %v115 = vsel %vm113, %v97, 0
    %117 = vmatprep.subr.bf16.mxu0 0
    %118 = vmatpush1.bf16.msra.mxu0 0
    %119 = vmatprep.subr.bf16.mxu0 0
    %120 = vmatpush1.bf16.msra.mxu0 0
    %121 = vmatprep.subr.bf16.mxu0 0
    %122 = vmatpush1.bf16.msra.mxu0 0
    %123 = vmatprep.subr.bf16.mxu0 0
    %124 = vmatpush1.bf16.msra.mxu0 0
    %125 = vmatprep.subr.bf16.mxu0 0
    %126 = vmatpush1.bf16.msra.mxu0 0
    %127 = vmatprep.subr.bf16.mxu0 0
    %128 = vmatpush1.bf16.msra.mxu0 0
    %129 = vmatprep.subr.bf16.mxu0 0
    %130 = vmatpush1.bf16.msra.mxu0 0
    %131 = vmatprep.subr.bf16.mxu0 0
    %132 = vmatpush1.bf16.msra.mxu0 %v111
    %133 = vmatprep.subr.bf16.mxu0 0
    %134 = vmatpush2.bf16.msra.mxu0 0
    %135 = vmatprep.subr.bf16.mxu0 0
    %136 = vmatpush2.bf16.msra.mxu0 0
    %137 = vmatprep.subr.bf16.mxu0 0
    %138 = vmatpush2.bf16.msra.mxu0 0
    %139 = vmatprep.subr.bf16.mxu0 0
    %140 = vmatpush2.bf16.msra.mxu0 0
    %141 = vmatprep.subr.bf16.mxu0 0
    %142 = vmatpush2.bf16.msra.mxu0 0
    %143 = vmatprep.subr.bf16.mxu0 0
    %144 = vmatpush2.bf16.msra.mxu0 0
    %145 = vmatprep.subr.bf16.mxu0 0
    %146 = vmatpush2.bf16.msra.mxu0 0
    %147 = vmatprep.subr.bf16.mxu0 0
    %148 = vmatpush2.bf16.msra.mxu0 0
    %149 = vmatprep.mubr.bf16.mxu0 0
    %150 = vmatmul.mubr.bf16.gmra.mxu0 %v115
    %v151 = vpop.f32.mrf.mxu0
    %v152 = vadd.f32 %v105, %v151
    %v153 = vpop.f32.mrf.mxu0
    %v154 = vpop.f32.mrf.mxu0
    %v155 = vpop.f32.mrf.mxu0
    %156 = vdwg.mxu0
    %v157 = vtanh.pop %v152
    %v158 = vld [vmem:[#allocation3] sm:$0xff]
    %v159 = vld [vmem:[#allocation3 + $0x8] sm:$0xff]
    %v160 = vpack.c.bf16 %v159, %v158
    %v161 = vld [vmem:[#allocation8] sm:$0xf]
    %v162 = vld [vmem:[#allocation8 + $0x4] sm:$0xf]
    %v163 = vld [vmem:[%s5] sm:$0x1]
    %v165 = vlaneseq
    %v166 = vshrl.u32 %v165, 7
    %v167 = vsub.s32 0, %v166
    %v168 = vrot.slane %v163, %v167
    %v172 = vunpack.c.l.b16 %v161
    %v173 = vunpack.c.l.b16 %v162
    %v174 = vpack.c.b16 %v173, %v172
    %v177 = vsel %vm113, %v160, 0
    %179 = vmatprep.subr.bf16.mxu0 0
    %180 = vmatpush1.bf16.msra.mxu0 0
    %181 = vmatprep.subr.bf16.mxu0 0
    %182 = vmatpush1.bf16.msra.mxu0 0
    %183 = vmatprep.subr.bf16.mxu0 0
    %184 = vmatpush1.bf16.msra.mxu0 0
    %185 = vmatprep.subr.bf16.mxu0 0
    %186 = vmatpush1.bf16.msra.mxu0 0
    %187 = vmatprep.subr.bf16.mxu0 0
    %188 = vmatpush1.bf16.msra.mxu0 0
    %189 = vmatprep.subr.bf16.mxu0 0
    %190 = vmatpush1.bf16.msra.mxu0 0
    %191 = vmatprep.subr.bf16.mxu0 0
    %192 = vmatpush1.bf16.msra.mxu0 0
    %193 = vmatprep.subr.bf16.mxu0 0
    %194 = vmatpush1.bf16.msra.mxu0 %v174
    %195 = vmatprep.subr.bf16.mxu0 0
    %196 = vmatpush2.bf16.msra.mxu0 0
    %197 = vmatprep.subr.bf16.mxu0 0
    %198 = vmatpush2.bf16.msra.mxu0 0
    %199 = vmatprep.subr.bf16.mxu0 0
    %200 = vmatpush2.bf16.msra.mxu0 0
    %201 = vmatprep.subr.bf16.mxu0 0
    %202 = vmatpush2.bf16.msra.mxu0 0
    %203 = vmatprep.subr.bf16.mxu0 0
    %204 = vmatpush2.bf16.msra.mxu0 0
    %205 = vmatprep.subr.bf16.mxu0 0
    %206 = vmatpush2.bf16.msra.mxu0 0
    %207 = vmatprep.subr.bf16.mxu0 0
    %208 = vmatpush2.bf16.msra.mxu0 0
    %209 = vmatprep.subr.bf16.mxu0 0
    %210 = vmatpush2.bf16.msra.mxu0 0
    %211 = vmatprep.mubr.bf16.mxu0 0
    %212 = vmatmul.mubr.bf16.gmra.mxu0 %v177
    %v213 = vpop.f32.mrf.mxu0
    %v214 = vadd.f32 %v168, %v213
    %v215 = vpop.f32.mrf.mxu0
    %v216 = vpop.f32.mrf.mxu0
    %v217 = vadd.f32 %v168, %v216
    %v218 = vpop.f32.mrf.mxu0
    %219 = vdwg.mxu0
    %v220 = vld [vmem:[#allocation10] sm:$0xf]
    %v221 = vld [vmem:[#allocation10 + $0x4] sm:$0xf]
    %v222 = vld [vmem:[#allocation10 + $0x8] sm:$0xf]
    %v223 = vld [vmem:[#allocation10 + $0xc] sm:$0xf]
    %v224 = vld [vmem:[%s7] sm:$0x1]
    %v229 = vunpack.c.l.b16 %v220
    %v230 = vunpack.c.l.b16 %v221
    %v231 = vunpack.c.l.b16 %v222
    %v232 = vunpack.c.l.b16 %v223
    %v233 = vpack.c.b16 %v230, %v229
    %v234 = vpack.c.b16 %v232, %v231
    %vm237 = vcmask 261120
    %v239 = vsel %vm237, 0, 0
    %241 = vmatprep.subr.bf16.mxu0 0
    %242 = vmatpush1.bf16.msra.mxu0 0
    %243 = vmatprep.subr.bf16.mxu0 0
    %244 = vmatpush1.bf16.msra.mxu0 0
    %245 = vmatprep.subr.bf16.mxu0 0
    %246 = vmatpush1.bf16.msra.mxu0 0
    %247 = vmatprep.subr.bf16.mxu0 0
    %248 = vmatpush1.bf16.msra.mxu0 0
    %249 = vmatprep.subr.bf16.mxu0 0
    %250 = vmatpush1.bf16.msra.mxu0 0
    %251 = vmatprep.subr.bf16.mxu0 0
    %252 = vmatpush1.bf16.msra.mxu0 0
    %253 = vmatprep.subr.bf16.mxu0 0
    %254 = vmatpush1.bf16.msra.mxu0 %v234
    %255 = vmatprep.subr.bf16.mxu0 0
    %256 = vmatpush1.bf16.msra.mxu0 %v233
    %257 = vmatprep.subr.bf16.mxu0 0
    %258 = vmatpush2.bf16.msra.mxu0 0
    %259 = vmatprep.subr.bf16.mxu0 0
    %260 = vmatpush2.bf16.msra.mxu0 0
    %261 = vmatprep.subr.bf16.mxu0 0
    %262 = vmatpush2.bf16.msra.mxu0 0
    %263 = vmatprep.subr.bf16.mxu0 0
    %264 = vmatpush2.bf16.msra.mxu0 0
    %265 = vmatprep.subr.bf16.mxu0 0
    %266 = vmatpush2.bf16.msra.mxu0 0
    %267 = vmatprep.subr.bf16.mxu0 0
    %268 = vmatpush2.bf16.msra.mxu0 0
    %269 = vmatprep.subr.bf16.mxu0 0
    %270 = vmatpush2.bf16.msra.mxu0 0
    %271 = vmatprep.subr.bf16.mxu0 0
    %272 = vmatpush2.bf16.msra.mxu0 0
    %273 = vmatprep.mubr.bf16.mxu0 0
    %274 = vmatmul.mubr.bf16.gmra.mxu0 %v239
    %v275 = vpop.f32.mrf.mxu0
    %v276 = vadd.f32 0.0, %v275
    %v277 = vpop.f32.mrf.mxu0
    %v278 = vpop.f32.mrf.mxu0
    %v279 = vpop.f32.mrf.mxu0
    %280 = vdwg.mxu0
    %v281 = vadd.f32 %v214, %v276
    %v282 = vxor.u32 %v281, 2147483648
    %v283 = vmul.f32 %v282, 1.442695
    %v284 = vpow.pop %v283
    %v285 = vadd.f32 %v284, 1.0
    %v286 = vrcp.pop %v285
    %v287 = vmul.f32 1.0, %v286
    %v289 = vlaneseq
    %v290 = vshrl.u32 %v289, 7
    %v291 = vsub.s32 0, %v290
    %v292 = vrot.slane %v224, %v291
    %293 = vrot.lane.b32.xlu0 %v292, 64
    %v294 = vpop.permute.xlu0 %293
    %v296 = vadd.f32 %v276, %v294
    %298 = vrot.lane.b32.xlu0 %v296, 64
    %v299 = vpop.permute.xlu0 %298
    %v301 = vmul.f32 %v287, %v299
    %303 = vrot.lane.b32.xlu0 %v301, 64
    %v304 = vpop.permute.xlu0 %303
    %v306 = vadd.f32 %v214, %v304
    %v307 = vtanh.pop %v306
    %v308 = vsub.f32 1.0, %v287
    %310 = vrot.lane.b32.xlu0 %v307, 96
    %v311 = vpop.permute.xlu0 %310
    %v313 = vmul.f32 %v308, %v311
    %v314 = vmul.f32 %v287, 0.0
    %v315 = vadd.f32 %v313, %v314
    %317 = vrot.lane.b32.xlu0 %v315, 96
    %v318 = vpop.permute.xlu0 %317
    %vm320 = vcmask 254976
    %321 = vst.msk [vmem:[#allocation2] sm:$0x3] %vm320, %v318
    %v322 = vpack.c.bf16 %v315, %v315
    %324 = vrot.lane.b32.xlu0 %v322, 96
    %v325 = vpop.permute.xlu0 %324
    %v327 = vsel %vm237, %v325, 0
    %329 = vmatprep.subr.bf16.mxu0 0
    %330 = vmatpush1.bf16.msra.mxu0 0
    %331 = vmatprep.subr.bf16.mxu0 0
    %332 = vmatpush1.bf16.msra.mxu0 0
    %333 = vmatprep.subr.bf16.mxu0 0
    %334 = vmatpush1.bf16.msra.mxu0 0
    %335 = vmatprep.subr.bf16.mxu0 0
    %336 = vmatpush1.bf16.msra.mxu0 0
    %337 = vmatprep.subr.bf16.mxu0 0
    %338 = vmatpush1.bf16.msra.mxu0 0
    %339 = vmatprep.subr.bf16.mxu0 0
    %340 = vmatpush1.bf16.msra.mxu0 0
    %341 = vmatprep.subr.bf16.mxu0 0
    %342 = vmatpush1.bf16.msra.mxu0 %v234
    %343 = vmatprep.subr.bf16.mxu0 0
    %344 = vmatpush1.bf16.msra.mxu0 %v233
    %345 = vmatprep.subr.bf16.mxu0 0
    %346 = vmatpush2.bf16.msra.mxu0 0
    %347 = vmatprep.subr.bf16.mxu0 0
    %348 = vmatpush2.bf16.msra.mxu0 0
    %349 = vmatprep.subr.bf16.mxu0 0
    %350 = vmatpush2.bf16.msra.mxu0 0
    %351 = vmatprep.subr.bf16.mxu0 0
    %352 = vmatpush2.bf16.msra.mxu0 0
    %353 = vmatprep.subr.bf16.mxu0 0
    %354 = vmatpush2.bf16.msra.mxu0 0
    %355 = vmatprep.subr.bf16.mxu0 0
    %356 = vmatpush2.bf16.msra.mxu0 0
    %357 = vmatprep.subr.bf16.mxu0 0
    %358 = vmatpush2.bf16.msra.mxu0 0
    %359 = vmatprep.subr.bf16.mxu0 0
    %360 = vmatpush2.bf16.msra.mxu0 0
    %361 = vmatprep.mubr.bf16.mxu0 0
    %362 = vmatmul.mubr.bf16.gmra.mxu0 %v327
    %v363 = vpop.f32.mrf.mxu0
    %v364 = vadd.f32 0.0, %v363
    %v365 = vpop.f32.mrf.mxu0
    %v366 = vpop.f32.mrf.mxu0
    %v367 = vpop.f32.mrf.mxu0
    %368 = vdwg.mxu0
    %v370 = vrot.slane %v364, 6
    %v372 = vadd.f32 %v214, %v370
    %v373 = vxor.u32 %v372, 2147483648
    %v374 = vmul.f32 %v373, 1.442695
    %v375 = vpow.pop %v374
    %v376 = vadd.f32 %v375, 1.0
    %v377 = vrcp.pop %v376
    %v378 = vmul.f32 1.0, %v377
    %v379 = vadd.f32 %v364, %v294
    %v381 = vrot.slane %v379, 6
    %382 = vrot.lane.b32.xlu0 %v381, 64
    %v383 = vpop.permute.xlu0 %382
    %v385 = vmul.f32 %v378, %v383
    %387 = vrot.lane.b32.xlu0 %v385, 64
    %v388 = vpop.permute.xlu0 %387
    %v390 = vadd.f32 %v214, %v388
    %v391 = vtanh.pop %v390
    %v392 = vsub.f32 1.0, %v378
    %394 = vrot.lane.b32.xlu0 %v391, 96
    %v395 = vpop.permute.xlu0 %394
    %v397 = vmul.f32 %v392, %v395
    %v398 = vrot.slane %v315, 6
    %v400 = vmul.f32 %v378, %v398
    %v401 = vadd.f32 %v397, %v400
    %403 = vrot.lane.b32.xlu0 %v401, 96
    %v404 = vpop.permute.xlu0 %403
    %s406 = scalar_lea.vmem [#allocation2], 2
    %vm407 = vcmask 257026
    %408 = vst.msk [vmem:[%s406 - $0x2] sm:$0xc] %vm407, %v404
    %v409 = vpack.c.bf16 %v401, %v401
    %v411 = vrot.slane %v409, 1
    %412 = vrot.lane.b32.xlu0 %v411, 96
    %v413 = vpop.permute.xlu0 %412
    %v415 = vsel %vm237, %v413, 0
    %417 = vmatprep.subr.bf16.mxu0 0
    %418 = vmatpush1.bf16.msra.mxu0 0
    %419 = vmatprep.subr.bf16.mxu0 0
    %420 = vmatpush1.bf16.msra.mxu0 0
    %421 = vmatprep.subr.bf16.mxu0 0
    %422 = vmatpush1.bf16.msra.mxu0 0
    %423 = vmatprep.subr.bf16.mxu0 0
    %424 = vmatpush1.bf16.msra.mxu0 0
    %425 = vmatprep.subr.bf16.mxu0 0
    %426 = vmatpush1.bf16.msra.mxu0 0
    %427 = vmatprep.subr.bf16.mxu0 0
    %428 = vmatpush1.bf16.msra.mxu0 0
    %429 = vmatprep.subr.bf16.mxu0 0
    %430 = vmatpush1.bf16.msra.mxu0 %v234
    %431 = vmatprep.subr.bf16.mxu0 0
    %432 = vmatpush1.bf16.msra.mxu0 %v233
    %433 = vmatprep.subr.bf16.mxu0 0
    %434 = vmatpush2.bf16.msra.mxu0 0
    %435 = vmatprep.subr.bf16.mxu0 0
    %436 = vmatpush2.bf16.msra.mxu0 0
    %437 = vmatprep.subr.bf16.mxu0 0
    %438 = vmatpush2.bf16.msra.mxu0 0
    %439 = vmatprep.subr.bf16.mxu0 0
    %440 = vmatpush2.bf16.msra.mxu0 0
    %441 = vmatprep.subr.bf16.mxu0 0
    %442 = vmatpush2.bf16.msra.mxu0 0
    %443 = vmatprep.subr.bf16.mxu0 0
    %444 = vmatpush2.bf16.msra.mxu0 0
    %445 = vmatprep.subr.bf16.mxu0 0
    %446 = vmatpush2.bf16.msra.mxu0 0
    %447 = vmatprep.subr.bf16.mxu0 0
    %448 = vmatpush2.bf16.msra.mxu0 0
    %449 = vmatprep.mubr.bf16.mxu0 0
    %450 = vmatmul.mubr.bf16.gmra.mxu0 %v415
    %v451 = vpop.f32.mrf.mxu0
    %v452 = vadd.f32 0.0, %v451
    %v453 = vpop.f32.mrf.mxu0
    %v454 = vpop.f32.mrf.mxu0
    %v455 = vpop.f32.mrf.mxu0
    %456 = vdwg.mxu0
    %v458 = vrot.slane %v452, 4
    %v460 = vadd.f32 %v214, %v458
    %v461 = vxor.u32 %v460, 2147483648
    %v462 = vmul.f32 %v461, 1.442695
    %v463 = vpow.pop %v462
    %v464 = vadd.f32 %v463, 1.0
    %v465 = vrcp.pop %v464
    %v466 = vmul.f32 1.0, %v465
    %v467 = vadd.f32 %v452, %v294
    %v469 = vrot.slane %v467, 4
    %470 = vrot.lane.b32.xlu0 %v469, 64
    %v471 = vpop.permute.xlu0 %470
    %v473 = vmul.f32 %v466, %v471
    %475 = vrot.lane.b32.xlu0 %v473, 64
    %v476 = vpop.permute.xlu0 %475
    %v478 = vadd.f32 %v214, %v476
    %v479 = vtanh.pop %v478
    %v480 = vsub.f32 1.0, %v466
    %482 = vrot.lane.b32.xlu0 %v479, 96
    %v483 = vpop.permute.xlu0 %482
    %v485 = vmul.f32 %v480, %v483
    %v486 = vrot.slane %v401, 6
    %v488 = vmul.f32 %v466, %v486
    %v489 = vadd.f32 %v485, %v488
    %491 = vrot.lane.b32.xlu0 %v489, 96
    %v492 = vpop.permute.xlu0 %491
    %s494 = scalar_lea.vmem [#allocation2], 4
    %vm495 = vcmask 259076
    %496 = vst.msk [vmem:[%s494 - $0x4] sm:$0x30] %vm495, %v492
    %v497 = vpack.c.bf16 %v489, %v489
    %v499 = vrot.slane %v497, 2
    %500 = vrot.lane.b32.xlu0 %v499, 96
    %v501 = vpop.permute.xlu0 %500
    %v503 = vsel %vm237, %v501, 0
    %505 = vmatprep.subr.bf16.mxu0 0
    %506 = vmatpush1.bf16.msra.mxu0 0
    %507 = vmatprep.subr.bf16.mxu0 0
    %508 = vmatpush1.bf16.msra.mxu0 0
    %509 = vmatprep.subr.bf16.mxu0 0
    %510 = vmatpush1.bf16.msra.mxu0 0
    %511 = vmatprep.subr.bf16.mxu0 0
    %512 = vmatpush1.bf16.msra.mxu0 0
    %513 = vmatprep.subr.bf16.mxu0 0
    %514 = vmatpush1.bf16.msra.mxu0 0
    %515 = vmatprep.subr.bf16.mxu0 0
    %516 = vmatpush1.bf16.msra.mxu0 0
    %517 = vmatprep.subr.bf16.mxu0 0
    %518 = vmatpush1.bf16.msra.mxu0 %v234
    %519 = vmatprep.subr.bf16.mxu0 0
    %520 = vmatpush1.bf16.msra.mxu0 %v233
    %521 = vmatprep.subr.bf16.mxu0 0
    %522 = vmatpush2.bf16.msra.mxu0 0
    %523 = vmatprep.subr.bf16.mxu0 0
    %524 = vmatpush2.bf16.msra.mxu0 0
    %525 = vmatprep.subr.bf16.mxu0 0
    %526 = vmatpush2.bf16.msra.mxu0 0
    %527 = vmatprep.subr.bf16.mxu0 0
    %528 = vmatpush2.bf16.msra.mxu0 0
    %529 = vmatprep.subr.bf16.mxu0 0
    %530 = vmatpush2.bf16.msra.mxu0 0
    %531 = vmatprep.subr.bf16.mxu0 0
    %532 = vmatpush2.bf16.msra.mxu0 0
    %533 = vmatprep.subr.bf16.mxu0 0
    %534 = vmatpush2.bf16.msra.mxu0 0
    %535 = vmatprep.subr.bf16.mxu0 0
    %536 = vmatpush2.bf16.msra.mxu0 0
    %537 = vmatprep.mubr.bf16.mxu0 0
    %538 = vmatmul.mubr.bf16.gmra.mxu0 %v503
    %v539 = vpop.f32.mrf.mxu0
    %v540 = vadd.f32 0.0, %v539
    %v541 = vpop.f32.mrf.mxu0
    %v542 = vpop.f32.mrf.mxu0
    %v543 = vpop.f32.mrf.mxu0
    %544 = vdwg.mxu0
    %v546 = vrot.slane %v540, 2
    %v548 = vadd.f32 %v214, %v546
    %v549 = vxor.u32 %v548, 2147483648
    %v550 = vmul.f32 %v549, 1.442695
    %v551 = vpow.pop %v550
    %v552 = vadd.f32 %v551, 1.0
    %v553 = vrcp.pop %v552
    %v554 = vmul.f32 1.0, %v553
    %v555 = vadd.f32 %v540, %v294
    %v557 = vrot.slane %v555, 2
    %558 = vrot.lane.b32.xlu0 %v557, 64
    %v559 = vpop.permute.xlu0 %558
    %v561 = vmul.f32 %v554, %v559
    %563 = vrot.lane.b32.xlu0 %v561, 64
    %v564 = vpop.permute.xlu0 %563
    %v566 = vadd.f32 %v214, %v564
    %v567 = vtanh.pop %v566
    %v568 = vsub.f32 1.0, %v554
    %570 = vrot.lane.b32.xlu0 %v567, 96
    %v571 = vpop.permute.xlu0 %570
    %v573 = vmul.f32 %v568, %v571
    %v574 = vrot.slane %v489, 6
    %v576 = vmul.f32 %v554, %v574
    %v577 = vadd.f32 %v573, %v576
    %579 = vrot.lane.b32.xlu0 %v577, 96
    %v580 = vpop.permute.xlu0 %579
    %s582 = scalar_lea.vmem [#allocation2], 6
    %vm583 = vcmask 261126
    %584 = vst.msk [vmem:[%s582 - $0x6] sm:$0xc0] %vm583, %v580
    %v585 = vpack.c.bf16 %v577, %v577
    %v587 = vrot.slane %v585, 3
    %588 = vrot.lane.b32.xlu0 %v587, 96
    %v589 = vpop.permute.xlu0 %588
    %v591 = vsel %vm237, %v589, 0
    %593 = vmatprep.subr.bf16.mxu0 0
    %594 = vmatpush1.bf16.msra.mxu0 0
    %595 = vmatprep.subr.bf16.mxu0 0
    %596 = vmatpush1.bf16.msra.mxu0 0
    %597 = vmatprep.subr.bf16.mxu0 0
    %598 = vmatpush1.bf16.msra.mxu0 0
    %599 = vmatprep.subr.bf16.mxu0 0
    %600 = vmatpush1.bf16.msra.mxu0 0
    %601 = vmatprep.subr.bf16.mxu0 0
    %602 = vmatpush1.bf16.msra.mxu0 0
    %603 = vmatprep.subr.bf16.mxu0 0
    %604 = vmatpush1.bf16.msra.mxu0 0
    %605 = vmatprep.subr.bf16.mxu0 0
    %606 = vmatpush1.bf16.msra.mxu0 %v234
    %607 = vmatprep.subr.bf16.mxu0 0
    %608 = vmatpush1.bf16.msra.mxu0 %v233
    %609 = vmatprep.subr.bf16.mxu0 0
    %610 = vmatpush2.bf16.msra.mxu0 0
    %611 = vmatprep.subr.bf16.mxu0 0
    %612 = vmatpush2.bf16.msra.mxu0 0
    %613 = vmatprep.subr.bf16.mxu0 0
    %614 = vmatpush2.bf16.msra.mxu0 0
    %615 = vmatprep.subr.bf16.mxu0 0
    %616 = vmatpush2.bf16.msra.mxu0 0
    %617 = vmatprep.subr.bf16.mxu0 0
    %618 = vmatpush2.bf16.msra.mxu0 0
    %619 = vmatprep.subr.bf16.mxu0 0
    %620 = vmatpush2.bf16.msra.mxu0 0
    %621 = vmatprep.subr.bf16.mxu0 0
    %622 = vmatpush2.bf16.msra.mxu0 0
    %623 = vmatprep.subr.bf16.mxu0 0
    %624 = vmatpush2.bf16.msra.mxu0 0
    %625 = vmatprep.mubr.bf16.mxu0 0
    %626 = vmatmul.mubr.bf16.gmra.mxu0 %v591
    %v627 = vpop.f32.mrf.mxu0
    %v628 = vadd.f32 0.0, %v627
    %v629 = vpop.f32.mrf.mxu0
    %v630 = vpop.f32.mrf.mxu0
    %v631 = vpop.f32.mrf.mxu0
    %632 = vdwg.mxu0
    %v633 = vadd.f32 %v217, %v628
    %v634 = vxor.u32 %v633, 2147483648
    %v635 = vmul.f32 %v634, 1.442695
    %v636 = vpow.pop %v635
    %v637 = vadd.f32 %v636, 1.0
    %v638 = vrcp.pop %v637
    %v639 = vmul.f32 1.0, %v638
    %v640 = vadd.f32 %v628, %v294
    %642 = vrot.lane.b32.xlu0 %v640, 64
    %v643 = vpop.permute.xlu0 %642
    %v645 = vmul.f32 %v639, %v643
    %647 = vrot.lane.b32.xlu0 %v645, 64
    %v648 = vpop.permute.xlu0 %647
    %v650 = vadd.f32 %v217, %v648
    %v651 = vtanh.pop %v650
    %v652 = vsub.f32 1.0, %v639
    %654 = vrot.lane.b32.xlu0 %v651, 96
    %v655 = vpop.permute.xlu0 %654
    %v657 = vmul.f32 %v652, %v655
    %v658 = vrot.slane %v577, 6
    %v660 = vmul.f32 %v639, %v658
    %v661 = vadd.f32 %v657, %v660
    %663 = vrot.lane.b32.xlu0 %v661, 96
    %v664 = vpop.permute.xlu0 %663
    %s666 = scalar_lea.vmem [#allocation2], 8
    %667 = vst.msk [vmem:[%s666] sm:$0x3] %vm320, %v664
    %v668 = vpack.c.bf16 %v661, %v661
    %670 = vrot.lane.b32.xlu0 %v668, 96
    %v671 = vpop.permute.xlu0 %670
    %v673 = vsel %vm237, %v671, 0
    %675 = vmatprep.subr.bf16.mxu0 0
    %676 = vmatpush1.bf16.msra.mxu0 0
    %677 = vmatprep.subr.bf16.mxu0 0
    %678 = vmatpush1.bf16.msra.mxu0 0
    %679 = vmatprep.subr.bf16.mxu0 0
    %680 = vmatpush1.bf16.msra.mxu0 0
    %681 = vmatprep.subr.bf16.mxu0 0
    %682 = vmatpush1.bf16.msra.mxu0 0
    %683 = vmatprep.subr.bf16.mxu0 0
    %684 = vmatpush1.bf16.msra.mxu0 0
    %685 = vmatprep.subr.bf16.mxu0 0
    %686 = vmatpush1.bf16.msra.mxu0 0
    %687 = vmatprep.subr.bf16.mxu0 0
    %688 = vmatpush1.bf16.msra.mxu0 %v234
    %689 = vmatprep.subr.bf16.mxu0 0
    %690 = vmatpush1.bf16.msra.mxu0 %v233
    %691 = vmatprep.subr.bf16.mxu0 0
    %692 = vmatpush2.bf16.msra.mxu0 0
    %693 = vmatprep.subr.bf16.mxu0 0
    %694 = vmatpush2.bf16.msra.mxu0 0
    %695 = vmatprep.subr.bf16.mxu0 0
    %696 = vmatpush2.bf16.msra.mxu0 0
    %697 = vmatprep.subr.bf16.mxu0 0
    %698 = vmatpush2.bf16.msra.mxu0 0
    %699 = vmatprep.subr.bf16.mxu0 0
    %700 = vmatpush2.bf16.msra.mxu0 0
    %701 = vmatprep.subr.bf16.mxu0 0
    %702 = vmatpush2.bf16.msra.mxu0 0
    %703 = vmatprep.subr.bf16.mxu0 0
    %704 = vmatpush2.bf16.msra.mxu0 0
    %705 = vmatprep.subr.bf16.mxu0 0
    %706 = vmatpush2.bf16.msra.mxu0 0
    %707 = vmatprep.mubr.bf16.mxu0 0
    %708 = vmatmul.mubr.bf16.gmra.mxu0 %v673
    %v709 = vpop.f32.mrf.mxu0
    %v710 = vadd.f32 0.0, %v709
    %v711 = vpop.f32.mrf.mxu0
    %v712 = vpop.f32.mrf.mxu0
    %v713 = vpop.f32.mrf.mxu0
    %714 = vdwg.mxu0
    %v716 = vrot.slane %v710, 6
    %v718 = vadd.f32 %v217, %v716
    %v719 = vxor.u32 %v718, 2147483648
    %v720 = vmul.f32 %v719, 1.442695
    %v721 = vpow.pop %v720
    %v722 = vadd.f32 %v721, 1.0
    %v723 = vrcp.pop %v722
    %v724 = vmul.f32 1.0, %v723
    %v725 = vadd.f32 %v710, %v294
    %v727 = vrot.slane %v725, 6
    %728 = vrot.lane.b32.xlu0 %v727, 64
    %v729 = vpop.permute.xlu0 %728
    %v731 = vmul.f32 %v724, %v729
    %733 = vrot.lane.b32.xlu0 %v731, 64
    %v734 = vpop.permute.xlu0 %733
    %v736 = vadd.f32 %v217, %v734
    %v737 = vtanh.pop %v736
    %v738 = vsub.f32 1.0, %v724
    %740 = vrot.lane.b32.xlu0 %v737, 96
    %v741 = vpop.permute.xlu0 %740
    %v743 = vmul.f32 %v738, %v741
    %v744 = vrot.slane %v661, 6
    %v746 = vmul.f32 %v724, %v744
    %v747 = vadd.f32 %v743, %v746
    %749 = vrot.lane.b32.xlu0 %v747, 96
    %v750 = vpop.permute.xlu0 %749
    %s752 = scalar_lea.vmem [#allocation2], 10
    %753 = vst.msk [vmem:[%s752 - $0x2] sm:$0xc] %vm407, %v750
    %v754 = vpack.c.bf16 %v747, %v747
    %v756 = vrot.slane %v754, 1
    %757 = vrot.lane.b32.xlu0 %v756, 96
    %v758 = vpop.permute.xlu0 %757
    %v760 = vsel %vm237, %v758, 0
    %762 = vmatprep.subr.bf16.mxu0 0
    %763 = vmatpush1.bf16.msra.mxu0 0
    %764 = vmatprep.subr.bf16.mxu0 0
    %765 = vmatpush1.bf16.msra.mxu0 0
    %766 = vmatprep.subr.bf16.mxu0 0
    %767 = vmatpush1.bf16.msra.mxu0 0
    %768 = vmatprep.subr.bf16.mxu0 0
    %769 = vmatpush1.bf16.msra.mxu0 0
    %770 = vmatprep.subr.bf16.mxu0 0
    %771 = vmatpush1.bf16.msra.mxu0 0
    %772 = vmatprep.subr.bf16.mxu0 0
    %773 = vmatpush1.bf16.msra.mxu0 0
    %774 = vmatprep.subr.bf16.mxu0 0
    %775 = vmatpush1.bf16.msra.mxu0 %v234
    %776 = vmatprep.subr.bf16.mxu0 0
    %777 = vmatpush1.bf16.msra.mxu0 %v233
    %778 = vmatprep.subr.bf16.mxu0 0
    %779 = vmatpush2.bf16.msra.mxu0 0
    %780 = vmatprep.subr.bf16.mxu0 0
    %781 = vmatpush2.bf16.msra.mxu0 0
    %782 = vmatprep.subr.bf16.mxu0 0
    %783 = vmatpush2.bf16.msra.mxu0 0
    %784 = vmatprep.subr.bf16.mxu0 0
    %785 = vmatpush2.bf16.msra.mxu0 0
    %786 = vmatprep.subr.bf16.mxu0 0
    %787 = vmatpush2.bf16.msra.mxu0 0
    %788 = vmatprep.subr.bf16.mxu0 0
    %789 = vmatpush2.bf16.msra.mxu0 0
    %790 = vmatprep.subr.bf16.mxu0 0
    %791 = vmatpush2.bf16.msra.mxu0 0
    %792 = vmatprep.subr.bf16.mxu0 0
    %793 = vmatpush2.bf16.msra.mxu0 0
    %794 = vmatprep.mubr.bf16.mxu0 0
    %795 = vmatmul.mubr.bf16.gmra.mxu0 %v760
    %v796 = vpop.f32.mrf.mxu0
    %v797 = vadd.f32 0.0, %v796
    %v798 = vpop.f32.mrf.mxu0
    %v799 = vpop.f32.mrf.mxu0
    %v800 = vpop.f32.mrf.mxu0
    %801 = vdwg.mxu0
    %v803 = vrot.slane %v797, 4
    %v805 = vadd.f32 %v217, %v803
    %v806 = vxor.u32 %v805, 2147483648
    %v807 = vmul.f32 %v806, 1.442695
    %v808 = vpow.pop %v807
    %v809 = vadd.f32 %v808, 1.0
    %v810 = vrcp.pop %v809
    %v811 = vmul.f32 1.0, %v810
    %v812 = vadd.f32 %v797, %v294
    %v814 = vrot.slane %v812, 4
    %815 = vrot.lane.b32.xlu0 %v814, 64
    %v816 = vpop.permute.xlu0 %815
    %v818 = vmul.f32 %v811, %v816
    %820 = vrot.lane.b32.xlu0 %v818, 64
    %v821 = vpop.permute.xlu0 %820
    %v823 = vadd.f32 %v217, %v821
    %v824 = vtanh.pop %v823
    %v825 = vsub.f32 1.0, %v811
    %827 = vrot.lane.b32.xlu0 %v824, 96
    %v828 = vpop.permute.xlu0 %827
    %v830 = vmul.f32 %v825, %v828
    %v831 = vrot.slane %v747, 6
    %v833 = vmul.f32 %v811, %v831
    %v834 = vadd.f32 %v830, %v833
    %836 = vrot.lane.b32.xlu0 %v834, 96
    %v837 = vpop.permute.xlu0 %836
    %s839 = scalar_lea.vmem [#allocation2], 12
    %840 = vst.msk [vmem:[%s839 - $0x4] sm:$0x30] %vm495, %v837
    %v841 = vpack.c.bf16 %v834, %v834
    %v843 = vrot.slane %v841, 2
    %844 = vrot.lane.b32.xlu0 %v843, 96
    %v845 = vpop.permute.xlu0 %844
    %v847 = vsel %vm237, %v845, 0
    %849 = vmatprep.subr.bf16.mxu0 0
    %850 = vmatpush1.bf16.msra.mxu0 0
    %851 = vmatprep.subr.bf16.mxu0 0
    %852 = vmatpush1.bf16.msra.mxu0 0
    %853 = vmatprep.subr.bf16.mxu0 0
    %854 = vmatpush1.bf16.msra.mxu0 0
    %855 = vmatprep.subr.bf16.mxu0 0
    %856 = vmatpush1.bf16.msra.mxu0 0
    %857 = vmatprep.subr.bf16.mxu0 0
    %858 = vmatpush1.bf16.msra.mxu0 0
    %859 = vmatprep.subr.bf16.mxu0 0
    %860 = vmatpush1.bf16.msra.mxu0 0
    %861 = vmatprep.subr.bf16.mxu0 0
    %862 = vmatpush1.bf16.msra.mxu0 %v234
    %863 = vmatprep.subr.bf16.mxu0 0
    %864 = vmatpush1.bf16.msra.mxu0 %v233
    %865 = vmatprep.subr.bf16.mxu0 0
    %866 = vmatpush2.bf16.msra.mxu0 0
    %867 = vmatprep.subr.bf16.mxu0 0
    %868 = vmatpush2.bf16.msra.mxu0 0
    %869 = vmatprep.subr.bf16.mxu0 0
    %870 = vmatpush2.bf16.msra.mxu0 0
    %871 = vmatprep.subr.bf16.mxu0 0
    %872 = vmatpush2.bf16.msra.mxu0 0
    %873 = vmatprep.subr.bf16.mxu0 0
    %874 = vmatpush2.bf16.msra.mxu0 0
    %875 = vmatprep.subr.bf16.mxu0 0
    %876 = vmatpush2.bf16.msra.mxu0 0
    %877 = vmatprep.subr.bf16.mxu0 0
    %878 = vmatpush2.bf16.msra.mxu0 0
    %879 = vmatprep.subr.bf16.mxu0 0
    %880 = vmatpush2.bf16.msra.mxu0 0
    %881 = vmatprep.mubr.bf16.mxu0 0
    %882 = vmatmul.mubr.bf16.gmra.mxu0 %v847
    %v883 = vpop.f32.mrf.mxu0
    %v884 = vadd.f32 0.0, %v883
    %v885 = vpop.f32.mrf.mxu0
    %v886 = vpop.f32.mrf.mxu0
    %v887 = vpop.f32.mrf.mxu0
    %888 = vdwg.mxu0
    %v890 = vrot.slane %v884, 2
    %v892 = vadd.f32 %v217, %v890
    %v893 = vxor.u32 %v892, 2147483648
    %v894 = vmul.f32 %v893, 1.442695
    %v895 = vpow.pop %v894
    %v896 = vadd.f32 %v895, 1.0
    %v897 = vrcp.pop %v896
    %v898 = vmul.f32 1.0, %v897
    %v899 = vadd.f32 %v884, %v294
    %v901 = vrot.slane %v899, 2
    %902 = vrot.lane.b32.xlu0 %v901, 64
    %v903 = vpop.permute.xlu0 %902
    %v905 = vmul.f32 %v898, %v903
    %907 = vrot.lane.b32.xlu0 %v905, 64
    %v908 = vpop.permute.xlu0 %907
    %v910 = vadd.f32 %v217, %v908
    %v911 = vtanh.pop %v910
    %v912 = vsub.f32 1.0, %v898
    %914 = vrot.lane.b32.xlu0 %v911, 96
    %v915 = vpop.permute.xlu0 %914
    %v917 = vmul.f32 %v912, %v915
    %v918 = vrot.slane %v834, 6
    %v920 = vmul.f32 %v898, %v918
    %v921 = vadd.f32 %v917, %v920
    %923 = vrot.lane.b32.xlu0 %v921, 96
    %v924 = vpop.permute.xlu0 %923
    %s926 = scalar_lea.vmem [#allocation2], 14
    %927 = vst.msk [vmem:[%s926 - $0x6] sm:$0xc0] %vm583, %v924
    %v928 = vld [vmem:[#allocation2] sm:$0x1]
    %v929 = vld [vmem:[#allocation2 + $0x2] sm:$0x1]
    %v930 = vld [vmem:[#allocation2 + $0x4] sm:$0x1]
    %v931 = vld [vmem:[#allocation2 + $0x6] sm:$0x1]
    %v932 = vld [vmem:[#allocation2 + $0x8] sm:$0x1]
    %v933 = vld [vmem:[#allocation2 + $0xa] sm:$0x1]
    %v934 = vld [vmem:[#allocation2 + $0xc] sm:$0x1]
    %v935 = vld [vmem:[#allocation2 + $0xe] sm:$0x1]
    %v936 = vpack.c.bf16 %v928, %v928
    %v937 = vpack.c.bf16 %v929, %v929
    %v938 = vpack.c.bf16 %v930, %v930
    %v939 = vpack.c.bf16 %v931, %v931
    %v940 = vpack.c.bf16 %v932, %v932
    %v941 = vpack.c.bf16 %v933, %v933
    %v942 = vpack.c.bf16 %v934, %v934
    %v943 = vpack.c.bf16 %v935, %v935
    %v944 = vpack.c.bf16 %v157, %v157
    %v953 = vunpack.c.l.b16 %v936
    %v954 = vunpack.c.l.b16 %v937
    %v955 = vunpack.c.l.b16 %v938
    %v956 = vunpack.c.l.b16 %v939
    %v957 = vunpack.c.l.b16 %v940
    %v958 = vunpack.c.l.b16 %v941
    %v959 = vunpack.c.l.b16 %v942
    %v960 = vunpack.c.l.b16 %v943
    %v961 = vrot.slane %v954, 7
    %vm962 = vcmask 1041409
    %v963 = vsel %vm962, %v961, %v953
    %v964 = vrot.slane %v955, 6
    %vm965 = vcmask 1042434
    %v966 = vsel %vm965, %v964, %v963
    %v967 = vrot.slane %v956, 5
    %vm968 = vcmask 1043459
    %v969 = vsel %vm968, %v967, %v966
    %v970 = vrot.slane %v957, 4
    %vm971 = vcmask 1044484
    %v972 = vsel %vm971, %v970, %v969
    %v973 = vrot.slane %v958, 3
    %vm974 = vcmask 1045509
    %v975 = vsel %vm974, %v973, %v972
    %v976 = vrot.slane %v959, 2
    %vm977 = vcmask 1046534
    %v978 = vsel %vm977, %v976, %v975
    %v979 = vrot.slane %v960, 1
    %vm980 = vcmask 1047559
    %v981 = vsel %vm980, %v979, %v978
    %v982 = vpack.c.b16 %v981, %v981
    %v984 = vsel %vm237, %v982, 0
    %v987 = vsel %vm237, %v944, 0
    %989 = vmatprep.subr.bf16.mxu0 0
    %990 = vmatpush1.bf16.xpose.msra.mxu0 0
    %991 = vmatprep.subr.bf16.mxu0 0
    %992 = vmatpush1.bf16.xpose.msra.mxu0 0
    %993 = vmatprep.subr.bf16.mxu0 0
    %994 = vmatpush1.bf16.xpose.msra.mxu0 0
    %995 = vmatprep.subr.bf16.mxu0 0
    %996 = vmatpush1.bf16.xpose.msra.mxu0 0
    %997 = vmatprep.subr.bf16.mxu0 0
    %998 = vmatpush1.bf16.xpose.msra.mxu0 0
    %999 = vmatprep.subr.bf16.mxu0 0
    %1000 = vmatpush1.bf16.xpose.msra.mxu0 0
    %1001 = vmatprep.subr.bf16.mxu0 0
    %1002 = vmatpush1.bf16.xpose.msra.mxu0 0
    %1003 = vmatprep.subr.bf16.mxu0 0
    %1004 = vmatpush1.bf16.xpose.msra.mxu0 %v987
    %1005 = vmatprep.subr.bf16.mxu0 0
    %1006 = vmatpush2.bf16.xpose.msra.mxu0 0
    %1007 = vmatprep.subr.bf16.mxu0 0
    %1008 = vmatpush2.bf16.xpose.msra.mxu0 0
    %1009 = vmatprep.subr.bf16.mxu0 0
    %1010 = vmatpush2.bf16.xpose.msra.mxu0 0
    %1011 = vmatprep.subr.bf16.mxu0 0
    %1012 = vmatpush2.bf16.xpose.msra.mxu0 0
    %1013 = vmatprep.subr.bf16.mxu0 0
    %1014 = vmatpush2.bf16.xpose.msra.mxu0 0
    %1015 = vmatprep.subr.bf16.mxu0 0
    %1016 = vmatpush2.bf16.xpose.msra.mxu0 0
    %1017 = vmatprep.subr.bf16.mxu0 0
    %1018 = vmatpush2.bf16.xpose.msra.mxu0 0
    %1019 = vmatprep.subr.bf16.mxu0 0
    %1020 = vmatpush2.bf16.xpose.msra.mxu0 0
    %1021 = vmatprep.mubr.bf16.mxu0 0
    %1022 = vmatmul.mubr.bf16.gmra.mxu0 %v984
    %v1023 = vpop.f32.mrf.mxu0
    %v1024 = vadd.f32 0.0, %v1023
    %v1025 = vpop.f32.mrf.mxu0
    %v1026 = vpop.f32.mrf.mxu0
    %v1027 = vpop.f32.mrf.mxu0
    %1028 = vdwg.mxu0
    %v1029 = vld [vmem:[#allocation2 + $0x1] sm:$0x1]
    %v1030 = vld [vmem:[#allocation2 + $0x3] sm:$0x1]
    %v1031 = vld [vmem:[#allocation2 + $0x5] sm:$0x1]
    %v1032 = vld [vmem:[#allocation2 + $0x7] sm:$0x1]
    %v1033 = vld [vmem:[#allocation2 + $0x9] sm:$0x1]
    %v1034 = vld [vmem:[#allocation2 + $0xb] sm:$0x1]
    %v1035 = vld [vmem:[#allocation2 + $0xd] sm:$0x1]
    %v1036 = vld [vmem:[#allocation2 + $0xf] sm:$0x1]
    %v1037 = vpack.c.bf16 %v1029, %v1029
    %v1038 = vpack.c.bf16 %v1030, %v1030
    %v1039 = vpack.c.bf16 %v1031, %v1031
    %v1040 = vpack.c.bf16 %v1032, %v1032
    %v1041 = vpack.c.bf16 %v1033, %v1033
    %v1042 = vpack.c.bf16 %v1034, %v1034
    %v1043 = vpack.c.bf16 %v1035, %v1035
    %v1044 = vpack.c.bf16 %v1036, %v1036
    %v1053 = vunpack.c.l.b16 %v1037
    %v1054 = vunpack.c.l.b16 %v1038
    %v1055 = vunpack.c.l.b16 %v1039
    %v1056 = vunpack.c.l.b16 %v1040
    %v1057 = vunpack.c.l.b16 %v1041
    %v1058 = vunpack.c.l.b16 %v1042
    %v1059 = vunpack.c.l.b16 %v1043
    %v1060 = vunpack.c.l.b16 %v1044
    %v1061 = vrot.slane %v1054, 7
    %v1062 = vsel %vm962, %v1061, %v1053
    %v1063 = vrot.slane %v1055, 6
    %v1064 = vsel %vm965, %v1063, %v1062
    %v1065 = vrot.slane %v1056, 5
    %v1066 = vsel %vm968, %v1065, %v1064
    %v1067 = vrot.slane %v1057, 4
    %v1068 = vsel %vm971, %v1067, %v1066
    %v1069 = vrot.slane %v1058, 3
    %v1070 = vsel %vm974, %v1069, %v1068
    %v1071 = vrot.slane %v1059, 2
    %v1072 = vsel %vm977, %v1071, %v1070
    %v1073 = vrot.slane %v1060, 1
    %v1074 = vsel %vm980, %v1073, %v1072
    %v1075 = vpack.c.b16 %v1074, %v1074
    %v1077 = vrot.slane %v944, 2
    %v1079 = vsel %vm237, %v1075, 0
    %v1082 = vsel %vm237, %v1077, 0
    %1084 = vmatprep.subr.bf16.mxu0 0
    %1085 = vmatpush1.bf16.xpose.msra.mxu0 0
    %1086 = vmatprep.subr.bf16.mxu0 0
    %1087 = vmatpush1.bf16.xpose.msra.mxu0 0
    %1088 = vmatprep.subr.bf16.mxu0 0
    %1089 = vmatpush1.bf16.xpose.msra.mxu0 0
    %1090 = vmatprep.subr.bf16.mxu0 0
    %1091 = vmatpush1.bf16.xpose.msra.mxu0 0
    %1092 = vmatprep.subr.bf16.mxu0 0
    %1093 = vmatpush1.bf16.xpose.msra.mxu0 0
    %1094 = vmatprep.subr.bf16.mxu0 0
    %1095 = vmatpush1.bf16.xpose.msra.mxu0 0
    %1096 = vmatprep.subr.bf16.mxu0 0
    %1097 = vmatpush1.bf16.xpose.msra.mxu0 0
    %1098 = vmatprep.subr.bf16.mxu0 0
    %1099 = vmatpush1.bf16.xpose.msra.mxu0 %v1082
    %1100 = vmatprep.subr.bf16.mxu0 0
    %1101 = vmatpush2.bf16.xpose.msra.mxu0 0
    %1102 = vmatprep.subr.bf16.mxu0 0
    %1103 = vmatpush2.bf16.xpose.msra.mxu0 0
    %1104 = vmatprep.subr.bf16.mxu0 0
    %1105 = vmatpush2.bf16.xpose.msra.mxu0 0
    %1106 = vmatprep.subr.bf16.mxu0 0
    %1107 = vmatpush2.bf16.xpose.msra.mxu0 0
    %1108 = vmatprep.subr.bf16.mxu0 0
    %1109 = vmatpush2.bf16.xpose.msra.mxu0 0
    %1110 = vmatprep.subr.bf16.mxu0 0
    %1111 = vmatpush2.bf16.xpose.msra.mxu0 0
    %1112 = vmatprep.subr.bf16.mxu0 0
    %1113 = vmatpush2.bf16.xpose.msra.mxu0 0
    %1114 = vmatprep.subr.bf16.mxu0 0
    %1115 = vmatpush2.bf16.xpose.msra.mxu0 0
    %1116 = vmatprep.mubr.bf16.mxu0 0
    %1117 = vmatmul.mubr.bf16.gmra.mxu0 %v1079
    %v1118 = vpop.f32.mrf.mxu0
    %v1119 = vadd.f32 0.0, %v1118
    %v1120 = vpop.f32.mrf.mxu0
    %v1121 = vpop.f32.mrf.mxu0
    %v1122 = vpop.f32.mrf.mxu0
    %1123 = vdwg.mxu0
    %vm1124 = vcmask 31744
    %v1125 = vsel %vm1124, %v1024, -inf
    %1126 = vmax.xlane.f32.xlu0 %v1125
    %v1127 = vpop.xlane.xlu0 %1126
    %v1128 = vsel %vm1124, %v1119, -inf
    %1129 = vmax.xlane.f32.xlu0 %v1128
    %v1130 = vpop.xlane.xlu0 %1129
    %v1131 = vsub.f32 %v1024, %v1127
    %v1132 = vsub.f32 %v1119, %v1130
    %v1133 = vmul.f32 %v1131, 1.442695
    %v1134 = vpow.pop %v1133
    %v1135 = vmul.f32 %v1132, 1.442695
    %v1136 = vpow.pop %v1135
    %v1137 = vsel %vm1124, %v1134, 0.0
    %1138 = vadd.xlane.f32.xlu0 %v1137
    %v1139 = vpop.xlane.xlu0 %1138
    %v1140 = vsel %vm1124, %v1136, 0.0
    %1141 = vadd.xlane.f32.xlu0 %v1140
    %v1142 = vpop.xlane.xlu0 %1141
    %v1143 = vlog2.pop %v1139
    %v1144 = vmul.f32 %v1143, 0.6931472
    %v1145 = vlog2.pop %v1142
    %v1146 = vmul.f32 %v1145, 0.6931472
    %v1147 = vadd.f32 %v1127, %v1144
    %v1148 = vadd.f32 %v1130, %v1146
    %v1149 = vsub.f32 %v1024, %v1147
    %v1150 = vsub.f32 %v1119, %v1148
    %1151 = vst.msk [vmem:[%s8] sm:$0xff] %vm1124, %v1149
    %1152 = vst.msk [vmem:[%s8 + $0x8] sm:$0xff] %vm1124, %v1150
    // Predicated region
    $region54: #{tpu_custom_call.1} parent=1 // pred_check
      _
    $region55: #{tpu_custom_call.1} parent=1 // pred_check_branch
      %1154 = sbr.rel (0) target = $region57
    $region56: #{tpu_custom_call.1} parent=1 // pred_region
      _
    $region57: #{tpu_custom_call.1} parent=1 // pred_fallthru
      _
    // Predicated region
    $region58: #{tpu_custom_call.1} parent=1 // pred_check
      _
    $region59: #{tpu_custom_call.1} parent=1 // pred_check_branch
      %1156 = sbr.rel (0) target = $region61
    $region60: #{tpu_custom_call.1} parent=1 // pred_region
      _
    $region61: #{tpu_custom_call.1} parent=1 // pred_fallthru
      _
    %1157 = vsyncpa [#allocation4], 1
    %1158 = vsyncpa [#allocation6], 1
    %1159 = vsyncpa [#allocation9], 1

</llo_original>
